<compile_context>
chip_gen: v7x
topology: tpu7x:2x2x1
jax: 0.10.0
libtpu: 0.0.40
codegen_flags: <defaults>
</compile_context>

<pallas_src>
import jax
import jax.numpy as jnp
from jax.experimental import pallas as pl
from jax.experimental.pallas import tpu as pltpu

HIDDEN = 256
EPS = 1e-12
DROP_P = 0.1
_SCALE = 1.0 / (1.0 - DROP_P)
# keep element iff hash_bits >= p * 2^32   (keep probability = 1 - p)
_DROP_THRESHOLD = int(DROP_P * 4294967296.0)
# 2048 rows * 256 * 4B = 2 MiB per buffer; ~12 MiB double-buffered in/out,
# comfortably under the scoped-VMEM default on v5e / v6e / v7x.
_MAX_BLOCK_ROWS = 2048


def _dropout_add_ln_kernel(seed_ref, x_ref, res_ref, gamma_ref, beta_ref, o_ref):
    nrows, ncols = x_ref.shape
    x = x_ref[...].astype(jnp.float32)       # (block_rows, HIDDEN)
    res = res_ref[...].astype(jnp.float32)   # (block_rows, HIDDEN)

    # --- Dropout mask: counter-based hash PRNG (splitmix32-style) -----------
    row_ids = jax.lax.broadcasted_iota(jnp.int32, (nrows, ncols), 0)
    col_ids = jax.lax.broadcasted_iota(jnp.int32, (nrows, ncols), 1)
    row_off = pl.program_id(0) * nrows                        # global row offset
    ctr = ((row_ids + row_off) * ncols + col_ids).astype(jnp.uint32)
    z = ctr + seed_ref[0].astype(jnp.uint32) * jnp.uint32(0x9E3779B9)
    z = (z ^ (z >> 16)) * jnp.uint32(0x7FEB352D)
    z = (z ^ (z >> 15)) * jnp.uint32(0x846CA68B)
    bits = z ^ (z >> 16)                                      # uniform uint32
    keep = bits >= jnp.uint32(_DROP_THRESHOLD)                # P(keep) = 1 - p

    # --- Dropout (scale kept values) + residual add, fused ------------------
    y = res + jnp.where(keep, x * jnp.float32(_SCALE), jnp.float32(0.0))

    # --- LayerNorm over the hidden axis --------------------------------------
    inv_h = jnp.float32(1.0 / ncols)
    mean = jnp.sum(y, axis=-1, keepdims=True) * inv_h
    c = y - mean
    var = jnp.sum(c * c, axis=-1, keepdims=True) * inv_h
    inv_std = jax.lax.rsqrt(var + jnp.float32(EPS))           # eps on var (torch semantics)

    gamma = gamma_ref[...].astype(jnp.float32)                # (1, HIDDEN)
    beta = beta_ref[...].astype(jnp.float32)                  # (1, HIDDEN)
    o_ref[...] = (c * inv_std * gamma + beta).astype(o_ref.dtype)


@jax.jit
def dropout_add_layernorm(x398, x365, gamma, beta, seed):
    b, s, h = x398.shape
    assert h == HIDDEN
    rows = b * s

    x2 = x398.reshape(rows, h)
    r2 = x365.reshape(rows, h)

    # Single grid step when the whole slab fits comfortably in VMEM (the common
    # case); otherwise tile rows and pad up to a block multiple (padded rows
    # produce finite garbage that is sliced off afterwards).
    block_rows = rows if rows <= _MAX_BLOCK_ROWS else _MAX_BLOCK_ROWS
    n_blocks = pl.cdiv(rows, block_rows)
    padded_rows = n_blocks * block_rows
    if padded_rows != rows:
        pad = padded_rows - rows
        x2 = jnp.pad(x2, ((0, pad), (0, 0)))
        r2 = jnp.pad(r2, ((0, pad), (0, 0)))

    g2 = gamma.reshape(1, h)
    b2 = beta.reshape(1, h)
    seed_arr = jnp.asarray(seed, dtype=jnp.int32).reshape(1)

    out = pl.pallas_call(
        _dropout_add_ln_kernel,
        out_shape=jax.ShapeDtypeStruct((padded_rows, h), x398.dtype),
        grid_spec=pltpu.PrefetchScalarGridSpec(
            num_scalar_prefetch=1,
            grid=(n_blocks,),
            in_specs=[
                pl.BlockSpec((block_rows, h), lambda i, seed: (i, 0)),
                pl.BlockSpec((block_rows, h), lambda i, seed: (i, 0)),
                pl.BlockSpec((1, h), lambda i, seed: (0, 0)),
                pl.BlockSpec((1, h), lambda i, seed: (0, 0)),
            ],
            out_specs=pl.BlockSpec((block_rows, h), lambda i, seed: (i, 0)),
        ),
        compiler_params=pltpu.CompilerParams(
            # Row blocks are fully independent -> lets v7x use both TensorCores
            # when the grid has more than one step; no-op on v5e/v6e.
            dimension_semantics=("parallel",),
        ),
    )(seed_arr, x2, r2, g2, b2)

    if padded_rows != rows:
        out = out[:rows]
    return out.reshape(b, s, h)


if __name__ == "__main__":
    key = jax.random.PRNGKey(0)
    k1, k2 = jax.random.split(key)

    # Shapes consistent with the module's forward: [1, 384, 256]
    x398 = jax.random.normal(k1, (1, 384, 256), dtype=jnp.float32)
    x365 = jax.random.normal(k2, (1, 384, 256), dtype=jnp.float32)

    # LayerNorm(256) elementwise-affine params (PyTorch init: weight=1, bias=0).
    gamma = jnp.ones((256,), dtype=jnp.float32)
    beta = jnp.zeros((256,), dtype=jnp.float32)

    out = dropout_add_layernorm(x398, x365, gamma, beta, 0)
    out = jax.block_until_ready(out)

    assert out.shape == (1, 384, 256)
    assert out.dtype == jnp.float32
    assert bool(jnp.all(jnp.isfinite(out)))

    # LayerNorm sanity: with gamma=1, beta=0 every row should have ~0 mean, ~1 var.
    row_mean = jnp.mean(out, axis=-1)
    row_var = jnp.var(out, axis=-1)
    assert bool(jnp.all(jnp.abs(row_mean) < 1e-3))
    assert bool(jnp.all(jnp.abs(row_var - 1.0) < 1e-2))

    print("KERNEL_OK")
</pallas_src>

<mosaic_0001>
module attributes {stable_mosaic.version = 11 : i64} {
  func.func @_dropout_add_ln_kernel(%arg0: i32, %arg1: memref<1xi32, #tpu.memory_space<smem>>, %arg2: memref<384x256xf32, #tpu.memory_space<vmem>>, %arg3: memref<384x256xf32, #tpu.memory_space<vmem>>, %arg4: memref<1x256xf32, #tpu.memory_space<vmem>>, %arg5: memref<1x256xf32, #tpu.memory_space<vmem>>, %arg6: memref<384x256xf32, #tpu.memory_space<vmem>>) attributes {dimension_semantics = [#tpu.dimension_semantics<parallel>], iteration_bounds = array<i64: 1>, scalar_prefetch = 1 : i64, scratch_operands = 0 : i64, tpu.core_type = #tpu.core_type<tc>, window_params = [{transform_indices = @transform_0, window_bounds = array<i64: 384, 256>}, {transform_indices = @transform_1, window_bounds = array<i64: 384, 256>}, {pipeline_mode = #tpu.pipeline_mode<synchronous>, transform_indices = @transform_2, window_bounds = array<i64: 1, 256>}, {pipeline_mode = #tpu.pipeline_mode<synchronous>, transform_indices = @transform_3, window_bounds = array<i64: 1, 256>}, {transform_indices = @transform_4, window_bounds = array<i64: 384, 256>}]} {
    %c0 = arith.constant 0 : index
    %c0_0 = arith.constant 0 : index
    %0 = vector.load %arg2[%c0, %c0_0] : memref<384x256xf32, #tpu.memory_space<vmem>>, vector<384x256xf32>
    %c0_1 = arith.constant 0 : index
    %c0_2 = arith.constant 0 : index
    %1 = vector.load %arg3[%c0_1, %c0_2] : memref<384x256xf32, #tpu.memory_space<vmem>>, vector<384x256xf32>
    %2 = tpu.iota {dimensions = array<i32: 0>} : vector<384x256xi32>
    %3 = tpu.iota {dimensions = array<i32: 1>} : vector<384x256xi32>
    %c384_i32 = arith.constant 384 : i32
    %4 = arith.muli %arg0, %c384_i32 : i32
    %5 = vector.broadcast %4 : i32 to vector<384x256xi32>
    %6 = arith.addi %2, %5 : vector<384x256xi32>
    %c256_i32 = arith.constant 256 : i32
    %7 = vector.broadcast %c256_i32 : i32 to vector<384x256xi32>
    %8 = arith.muli %6, %7 : vector<384x256xi32>
    %9 = arith.addi %8, %3 : vector<384x256xi32>
    %c0_3 = arith.constant 0 : index
    %10 = memref.load %arg1[%c0_3] : memref<1xi32, #tpu.memory_space<smem>>
    %c-1640531527_i32 = arith.constant -1640531527 : i32
    %11 = arith.muli %10, %c-1640531527_i32 : i32
    %12 = vector.broadcast %11 : i32 to vector<384x256xi32>
    %13 = arith.addi %9, %12 : vector<384x256xi32>
    %c16_i32 = arith.constant 16 : i32
    %14 = vector.broadcast %c16_i32 : i32 to vector<384x256xi32>
    %15 = arith.shrui %13, %14 : vector<384x256xi32>
    %16 = arith.xori %13, %15 : vector<384x256xi32>
    %c2146121005_i32 = arith.constant 2146121005 : i32
    %17 = vector.broadcast %c2146121005_i32 : i32 to vector<384x256xi32>
    %18 = arith.muli %16, %17 : vector<384x256xi32>
    %c15_i32 = arith.constant 15 : i32
    %19 = vector.broadcast %c15_i32 : i32 to vector<384x256xi32>
    %20 = arith.shrui %18, %19 : vector<384x256xi32>
    %21 = arith.xori %18, %20 : vector<384x256xi32>
    %c-2073254261_i32 = arith.constant -2073254261 : i32
    %22 = vector.broadcast %c-2073254261_i32 : i32 to vector<384x256xi32>
    %23 = arith.muli %21, %22 : vector<384x256xi32>
    %c16_i32_4 = arith.constant 16 : i32
    %24 = vector.broadcast %c16_i32_4 : i32 to vector<384x256xi32>
    %25 = arith.shrui %23, %24 : vector<384x256xi32>
    %26 = arith.xori %23, %25 : vector<384x256xi32>
    %c429496729_i32 = arith.constant 429496729 : i32
    %27 = vector.broadcast %c429496729_i32 : i32 to vector<384x256xi32>
    %28 = arith.cmpi uge, %26, %27 : vector<384x256xi32>
    %cst = arith.constant 1.11111116 : f32
    %29 = vector.broadcast %cst : f32 to vector<384x256xf32>
    %30 = arith.mulf %0, %29 : vector<384x256xf32>
    %cst_5 = arith.constant 0.000000e+00 : f32
    %31 = vector.broadcast %cst_5 : f32 to vector<384x256xf32>
    %32 = arith.select %28, %30, %31 : vector<384x256xi1>, vector<384x256xf32>
    %33 = arith.addf %1, %32 : vector<384x256xf32>
    %cst_6 = arith.constant dense<0.000000e+00> : vector<384xf32>
    %34 = vector.multi_reduction <add>, %33, %cst_6 [1] : vector<384x256xf32> to vector<384xf32>
    %35 = vector.shape_cast %34 : vector<384xf32> to vector<384x1xf32>
    %cst_7 = arith.constant 3.906250e-03 : f32
    %36 = vector.broadcast %cst_7 : f32 to vector<384x1xf32>
    %37 = arith.mulf %35, %36 : vector<384x1xf32>
    %38 = vector.broadcast %37 : vector<384x1xf32> to vector<384x256xf32>
    %39 = arith.subf %33, %38 : vector<384x256xf32>
    %40 = arith.mulf %39, %39 : vector<384x256xf32>
    %cst_8 = arith.constant dense<0.000000e+00> : vector<384xf32>
    %41 = vector.multi_reduction <add>, %40, %cst_8 [1] : vector<384x256xf32> to vector<384xf32>
    %42 = vector.shape_cast %41 : vector<384xf32> to vector<384x1xf32>
    %cst_9 = arith.constant 3.906250e-03 : f32
    %43 = vector.broadcast %cst_9 : f32 to vector<384x1xf32>
    %44 = arith.mulf %42, %43 : vector<384x1xf32>
    %cst_10 = arith.constant 9.99999996E-13 : f32
    %45 = vector.broadcast %cst_10 : f32 to vector<384x1xf32>
    %46 = arith.addf %44, %45 : vector<384x1xf32>
    %47 = math.rsqrt %46 : vector<384x1xf32>
    %c0_11 = arith.constant 0 : index
    %c0_12 = arith.constant 0 : index
    %48 = vector.load %arg4[%c0_11, %c0_12] : memref<1x256xf32, #tpu.memory_space<vmem>>, vector<1x256xf32>
    %c0_13 = arith.constant 0 : index
    %c0_14 = arith.constant 0 : index
    %49 = vector.load %arg5[%c0_13, %c0_14] : memref<1x256xf32, #tpu.memory_space<vmem>>, vector<1x256xf32>
    %50 = vector.broadcast %47 : vector<384x1xf32> to vector<384x256xf32>
    %51 = arith.mulf %39, %50 : vector<384x256xf32>
    %52 = vector.broadcast %48 : vector<1x256xf32> to vector<384x256xf32>
    %53 = arith.mulf %51, %52 : vector<384x256xf32>
    %54 = vector.broadcast %49 : vector<1x256xf32> to vector<384x256xf32>
    %55 = arith.addf %53, %54 : vector<384x256xf32>
    %c0_15 = arith.constant 0 : index
    %c0_16 = arith.constant 0 : index
    %56 = vector.load %arg6[%c0_15, %c0_16] : memref<384x256xf32, #tpu.memory_space<vmem>>, vector<384x256xf32>
    tpu.vector_store %arg6[%c0_15, %c0_16], %55 {strides = array<i32>} : memref<384x256xf32, #tpu.memory_space<vmem>>, vector<384x256xf32>,
    return
  }
  func.func @transform_0(%arg0: i32, %arg1: memref<1xi32, #tpu.memory_space<smem>>) -> (i32, i32) {
    %c0_i32 = arith.constant 0 : i32
    %c0_i32_0 = arith.constant 0 : i32
    return %arg0, %c0_i32 : i32, i32
  }
  func.func @transform_1(%arg0: i32, %arg1: memref<1xi32, #tpu.memory_space<smem>>) -> (i32, i32) {
    %c0_i32 = arith.constant 0 : i32
    %c0_i32_0 = arith.constant 0 : i32
    return %arg0, %c0_i32 : i32, i32
  }
  func.func @transform_2(%arg0: i32, %arg1: memref<1xi32, #tpu.memory_space<smem>>) -> (i32, i32) {
    %c0_i32 = arith.constant 0 : i32
    %c0_i32_0 = arith.constant 0 : i32
    %c0_i32_1 = arith.constant 0 : i32
    return %c0_i32, %c0_i32_0 : i32, i32
  }
  func.func @transform_3(%arg0: i32, %arg1: memref<1xi32, #tpu.memory_space<smem>>) -> (i32, i32) {
    %c0_i32 = arith.constant 0 : i32
    %c0_i32_0 = arith.constant 0 : i32
    %c0_i32_1 = arith.constant 0 : i32
    return %c0_i32, %c0_i32_0 : i32, i32
  }
  func.func @transform_4(%arg0: i32, %arg1: memref<1xi32, #tpu.memory_space<smem>>) -> (i32, i32) {
    %c0_i32 = arith.constant 0 : i32
    %c0_i32_0 = arith.constant 0 : i32
    return %arg0, %c0_i32 : i32, i32
  }
}

</mosaic_0001>

<llo_original>
// kernel: dropout_add_layernorm.1
$region0: #{dropout_add_layernorm.1}
  #allocation0 [shape = 'u32[]', space=smem, size = 0x4, offset = 0x4, fixed_abs, tag = 'smem constant byte address 0x4 - core index']
  #allocation1 [shape = 'u32[144,128]{1,0:T(1,128)}', space=vmem, size = 0x12000, scoped, tag = 'internal scratch']
  #allocation2 [shape = 's32[1]{0}', space=sflag, size = 0x4, scoped, tag = 'scoped memory for dropout_add_layernorm.1']
  #allocation3 [shape = 's32[1]{0:T(128)S(6)}', space=smem, size = 0x200, scoped, tag = 'prefetched SMEM operand 0']
  %s0 = inlined_call_operand.<no memory space> [shape: s32[1], index: 0, kind: input, shape index: {}]
  %s1 = inlined_call_operand.hbm [shape: f32[384,256], index: 1, kind: input, shape index: {}]
  %s2 = inlined_call_operand.hbm [shape: f32[384,256], index: 2, kind: input, shape index: {}]
  %s3 = inlined_call_operand.vmem [shape: f32[1,256], index: 3, kind: input, shape index: {}]
  %s4 = inlined_call_operand.vmem [shape: f32[1,256], index: 4, kind: input, shape index: {}]
  %s5 = inlined_call_operand.hbm [shape: f32[384,256], index: 5, kind: output, shape index: {}]
  %s6 = sld [smem:[#allocation0]]
  $region34: #{dropout_add_layernorm.1} parent=0
    _
  %s8 = ssub.s32 1, %s6
  %s9 = scalar_select 0, %s8, %s6
  %10 = sst [smem:[#allocation3]] %s0
  $region1: #{dropout_add_layernorm.1} parent=0
    #allocation4 [shape = 'u8[393216]{0}', space=vmem, size = 0x60000, scoped, tag = 'input window, operand 1, single buffered']
    #allocation5 [shape = 's32[1]{0}', space=sflag, size = 0x4, scoped, tag = 'scoped memory for dropout_add_layernorm.1']
    #allocation6 [shape = 's32[1]{0}', space=sflag, size = 0x4, scoped, tag = 'scoped memory for dropout_add_layernorm.1']
    #allocation7 [shape = 'u8[393216]{0}', space=vmem, size = 0x60000, scoped, tag = 'input window, operand 2, single buffered']
    #allocation8 [shape = 's32[1]{0}', space=sflag, size = 0x4, scoped, tag = 'scoped memory for dropout_add_layernorm.1']
    #allocation9 [shape = 'u8[393216]{0}', space=vmem, size = 0x60000, scoped, tag = 'output window, operand 0, single buffered']
    %11 = vsyncpa [#allocation5], 0
    %12 = vsyncpa [#allocation8], 0
    %13 = vsyncpa [#allocation6], 0
    // Predicated region
    $region2: #{dropout_add_layernorm.1} parent=1 // pred_check
      _
    $region3: #{dropout_add_layernorm.1} parent=1 // pred_check_branch
      %15 = sbr.rel (0) target = $region5
    $region4: #{dropout_add_layernorm.1} parent=1 // pred_region
      %s17 = ssub.s32 12288, 12288
      %18 = vsyncadd [#allocation5], %s17
      %s19 = sshll.u32 [#allocation4], 4
      %s20 = int_to_ptr.vmem [resolvable:$true] %s19
      %25 = dma.hbm_to_vmem [thread:$0]  %s1, 12288, %s20, [#allocation5], 256, 256, 16
    $region5: #{dropout_add_layernorm.1} parent=1 // pred_fallthru
      _
    // Predicated region
    $region6: #{dropout_add_layernorm.1} parent=1 // pred_check
      _
    $region7: #{dropout_add_layernorm.1} parent=1 // pred_check_branch
      %27 = sbr.rel (0) target = $region9
    $region8: #{dropout_add_layernorm.1} parent=1 // pred_region
      %s29 = ssub.s32 12288, 12288
      %30 = vsyncadd [#allocation8], %s29
      %s31 = sshll.u32 [#allocation7], 4
      %s32 = int_to_ptr.vmem [resolvable:$true] %s31
      %37 = dma.hbm_to_vmem [thread:$0]  %s2, 12288, %s32, [#allocation8], 256, 256, 16
    $region9: #{dropout_add_layernorm.1} parent=1 // pred_fallthru
      _
    // Predicated region
    $region10: #{dropout_add_layernorm.1} parent=1 // pred_check
      _
    $region11: #{dropout_add_layernorm.1} parent=1 // pred_check_branch
      %39 = sbr.rel (0) target = $region13
    $region12: #{dropout_add_layernorm.1} parent=1 // pred_region
      _
    $region13: #{dropout_add_layernorm.1} parent=1 // pred_fallthru
      _
    // Predicated region
    $region14: #{dropout_add_layernorm.1} parent=1 // pred_check
      _
    $region15: #{dropout_add_layernorm.1} parent=1 // pred_check_branch
      %41 = sbr.rel (0) target = $region17
    $region16: #{dropout_add_layernorm.1} parent=1 // pred_region
      _
    $region17: #{dropout_add_layernorm.1} parent=1 // pred_fallthru
      _
    // Predicated region
    $region18: #{dropout_add_layernorm.1} parent=1 // pred_check
      _
    $region19: #{dropout_add_layernorm.1} parent=1 // pred_check_branch
      %43 = sbr.rel (0) target = $region21
    $region20: #{dropout_add_layernorm.1} parent=1 // pred_region
      %44 = dma.done [#allocation5], 12288
    $region21: #{dropout_add_layernorm.1} parent=1 // pred_fallthru
      _
    // Predicated region
    $region22: #{dropout_add_layernorm.1} parent=1 // pred_check
      _
    $region23: #{dropout_add_layernorm.1} parent=1 // pred_check_branch
      %46 = sbr.rel (0) target = $region25
    $region24: #{dropout_add_layernorm.1} parent=1 // pred_region
      %47 = dma.done [#allocation8], 12288
    $region25: #{dropout_add_layernorm.1} parent=1 // pred_fallthru
      _
    %v48 = vld [vmem:[#allocation4] sm:$0xff]
    %v49 = vld [vmem:[#allocation4 + $0x8] sm:$0xff]
    %v50 = vld [vmem:[#allocation4 + $0x10] sm:$0xff]
    %v51 = vld [vmem:[#allocation4 + $0x18] sm:$0xff]
    %v52 = vld [vmem:[#allocation4 + $0x20] sm:$0xff]
    %v53 = vld [vmem:[#allocation4 + $0x28] sm:$0xff]
    %v54 = vld [vmem:[#allocation4 + $0x30] sm:$0xff]
    %v55 = vld [vmem:[#allocation4 + $0x38] sm:$0xff]
    %v56 = vld [vmem:[#allocation4 + $0x40] sm:$0xff]
    %v57 = vld [vmem:[#allocation4 + $0x48] sm:$0xff]
    %v58 = vld [vmem:[#allocation4 + $0x50] sm:$0xff]
    %v59 = vld [vmem:[#allocation4 + $0x58] sm:$0xff]
    %v60 = vld [vmem:[#allocation4 + $0x60] sm:$0xff]
    %v61 = vld [vmem:[#allocation4 + $0x68] sm:$0xff]
    %v62 = vld [vmem:[#allocation4 + $0x70] sm:$0xff]
    %v63 = vld [vmem:[#allocation4 + $0x78] sm:$0xff]
    %v64 = vld [vmem:[#allocation4 + $0x80] sm:$0xff]
    %v65 = vld [vmem:[#allocation4 + $0x88] sm:$0xff]
    %v66 = vld [vmem:[#allocation4 + $0x90] sm:$0xff]
    %v67 = vld [vmem:[#allocation4 + $0x98] sm:$0xff]
    %v68 = vld [vmem:[#allocation4 + $0xa0] sm:$0xff]
    %v69 = vld [vmem:[#allocation4 + $0xa8] sm:$0xff]
    %v70 = vld [vmem:[#allocation4 + $0xb0] sm:$0xff]
    %v71 = vld [vmem:[#allocation4 + $0xb8] sm:$0xff]
    %v72 = vld [vmem:[#allocation4 + $0xc0] sm:$0xff]
    %v73 = vld [vmem:[#allocation4 + $0xc8] sm:$0xff]
    %v74 = vld [vmem:[#allocation4 + $0xd0] sm:$0xff]
    %v75 = vld [vmem:[#allocation4 + $0xd8] sm:$0xff]
    %v76 = vld [vmem:[#allocation4 + $0xe0] sm:$0xff]
    %v77 = vld [vmem:[#allocation4 + $0xe8] sm:$0xff]
    %v78 = vld [vmem:[#allocation4 + $0xf0] sm:$0xff]
    %v79 = vld [vmem:[#allocation4 + $0xf8] sm:$0xff]
    %v80 = vld [vmem:[#allocation4 + $0x100] sm:$0xff]
    %v81 = vld [vmem:[#allocation4 + $0x108] sm:$0xff]
    %v82 = vld [vmem:[#allocation4 + $0x110] sm:$0xff]
    %v83 = vld [vmem:[#allocation4 + $0x118] sm:$0xff]
    %v84 = vld [vmem:[#allocation4 + $0x120] sm:$0xff]
    %v85 = vld [vmem:[#allocation4 + $0x128] sm:$0xff]
    %v86 = vld [vmem:[#allocation4 + $0x130] sm:$0xff]
    %v87 = vld [vmem:[#allocation4 + $0x138] sm:$0xff]
    %v88 = vld [vmem:[#allocation4 + $0x140] sm:$0xff]
    %v89 = vld [vmem:[#allocation4 + $0x148] sm:$0xff]
    %v90 = vld [vmem:[#allocation4 + $0x150] sm:$0xff]
    %v91 = vld [vmem:[#allocation4 + $0x158] sm:$0xff]
    %v92 = vld [vmem:[#allocation4 + $0x160] sm:$0xff]
    %v93 = vld [vmem:[#allocation4 + $0x168] sm:$0xff]
    %v94 = vld [vmem:[#allocation4 + $0x170] sm:$0xff]
    %v95 = vld [vmem:[#allocation4 + $0x178] sm:$0xff]
    %v96 = vld [vmem:[#allocation4 + $0x180] sm:$0xff]
    %v97 = vld [vmem:[#allocation4 + $0x188] sm:$0xff]
    %v98 = vld [vmem:[#allocation4 + $0x190] sm:$0xff]
    %v99 = vld [vmem:[#allocation4 + $0x198] sm:$0xff]
    %v100 = vld [vmem:[#allocation4 + $0x1a0] sm:$0xff]
    %v101 = vld [vmem:[#allocation4 + $0x1a8] sm:$0xff]
    %v102 = vld [vmem:[#allocation4 + $0x1b0] sm:$0xff]
    %v103 = vld [vmem:[#allocation4 + $0x1b8] sm:$0xff]
    %v104 = vld [vmem:[#allocation4 + $0x1c0] sm:$0xff]
    %v105 = vld [vmem:[#allocation4 + $0x1c8] sm:$0xff]
    %v106 = vld [vmem:[#allocation4 + $0x1d0] sm:$0xff]
    %v107 = vld [vmem:[#allocation4 + $0x1d8] sm:$0xff]
    %v108 = vld [vmem:[#allocation4 + $0x1e0] sm:$0xff]
    %v109 = vld [vmem:[#allocation4 + $0x1e8] sm:$0xff]
    %v110 = vld [vmem:[#allocation4 + $0x1f0] sm:$0xff]
    %v111 = vld [vmem:[#allocation4 + $0x1f8] sm:$0xff]
    %v112 = vld [vmem:[#allocation4 + $0x200] sm:$0xff]
    %v113 = vld [vmem:[#allocation4 + $0x208] sm:$0xff]
    %v114 = vld [vmem:[#allocation4 + $0x210] sm:$0xff]
    %v115 = vld [vmem:[#allocation4 + $0x218] sm:$0xff]
    %v116 = vld [vmem:[#allocation4 + $0x220] sm:$0xff]
    %v117 = vld [vmem:[#allocation4 + $0x228] sm:$0xff]
    %v118 = vld [vmem:[#allocation4 + $0x230] sm:$0xff]
    %v119 = vld [vmem:[#allocation4 + $0x238] sm:$0xff]
    %v120 = vld [vmem:[#allocation4 + $0x240] sm:$0xff]
    %v121 = vld [vmem:[#allocation4 + $0x248] sm:$0xff]
    %v122 = vld [vmem:[#allocation4 + $0x250] sm:$0xff]
    %v123 = vld [vmem:[#allocation4 + $0x258] sm:$0xff]
    %v124 = vld [vmem:[#allocation4 + $0x260] sm:$0xff]
    %v125 = vld [vmem:[#allocation4 + $0x268] sm:$0xff]
    %v126 = vld [vmem:[#allocation4 + $0x270] sm:$0xff]
    %v127 = vld [vmem:[#allocation4 + $0x278] sm:$0xff]
    %v128 = vld [vmem:[#allocation4 + $0x280] sm:$0xff]
    %v129 = vld [vmem:[#allocation4 + $0x288] sm:$0xff]
    %v130 = vld [vmem:[#allocation4 + $0x290] sm:$0xff]
    %v131 = vld [vmem:[#allocation4 + $0x298] sm:$0xff]
    %v132 = vld [vmem:[#allocation4 + $0x2a0] sm:$0xff]
    %v133 = vld [vmem:[#allocation4 + $0x2a8] sm:$0xff]
    %v134 = vld [vmem:[#allocation4 + $0x2b0] sm:$0xff]
    %v135 = vld [vmem:[#allocation4 + $0x2b8] sm:$0xff]
    %v136 = vld [vmem:[#allocation4 + $0x2c0] sm:$0xff]
    %v137 = vld [vmem:[#allocation4 + $0x2c8] sm:$0xff]
    %v138 = vld [vmem:[#allocation4 + $0x2d0] sm:$0xff]
    %v139 = vld [vmem:[#allocation4 + $0x2d8] sm:$0xff]
    %v140 = vld [vmem:[#allocation4 + $0x2e0] sm:$0xff]
    %v141 = vld [vmem:[#allocation4 + $0x2e8] sm:$0xff]
    %v142 = vld [vmem:[#allocation4 + $0x2f0] sm:$0xff]
    %v143 = vld [vmem:[#allocation4 + $0x2f8] sm:$0xff]
    %v144 = vld [vmem:[#allocation7] sm:$0xff]
    %v145 = vld [vmem:[#allocation7 + $0x8] sm:$0xff]
    %v146 = vld [vmem:[#allocation7 + $0x10] sm:$0xff]
    %v147 = vld [vmem:[#allocation7 + $0x18] sm:$0xff]
    %v148 = vld [vmem:[#allocation7 + $0x20] sm:$0xff]
    %v149 = vld [vmem:[#allocation7 + $0x28] sm:$0xff]
    %v150 = vld [vmem:[#allocation7 + $0x30] sm:$0xff]
    %v151 = vld [vmem:[#allocation7 + $0x38] sm:$0xff]
    %v152 = vld [vmem:[#allocation7 + $0x40] sm:$0xff]
    %v153 = vld [vmem:[#allocation7 + $0x48] sm:$0xff]
    %v154 = vld [vmem:[#allocation7 + $0x50] sm:$0xff]
    %v155 = vld [vmem:[#allocation7 + $0x58] sm:$0xff]
    %v156 = vld [vmem:[#allocation7 + $0x60] sm:$0xff]
    %v157 = vld [vmem:[#allocation7 + $0x68] sm:$0xff]
    %v158 = vld [vmem:[#allocation7 + $0x70] sm:$0xff]
    %v159 = vld [vmem:[#allocation7 + $0x78] sm:$0xff]
    %v160 = vld [vmem:[#allocation7 + $0x80] sm:$0xff]
    %v161 = vld [vmem:[#allocation7 + $0x88] sm:$0xff]
    %v162 = vld [vmem:[#allocation7 + $0x90] sm:$0xff]
    %v163 = vld [vmem:[#allocation7 + $0x98] sm:$0xff]
    %v164 = vld [vmem:[#allocation7 + $0xa0] sm:$0xff]
    %v165 = vld [vmem:[#allocation7 + $0xa8] sm:$0xff]
    %v166 = vld [vmem:[#allocation7 + $0xb0] sm:$0xff]
    %v167 = vld [vmem:[#allocation7 + $0xb8] sm:$0xff]
    %v168 = vld [vmem:[#allocation7 + $0xc0] sm:$0xff]
    %v169 = vld [vmem:[#allocation7 + $0xc8] sm:$0xff]
    %v170 = vld [vmem:[#allocation7 + $0xd0] sm:$0xff]
    %v171 = vld [vmem:[#allocation7 + $0xd8] sm:$0xff]
    %v172 = vld [vmem:[#allocation7 + $0xe0] sm:$0xff]
    %v173 = vld [vmem:[#allocation7 + $0xe8] sm:$0xff]
    %v174 = vld [vmem:[#allocation7 + $0xf0] sm:$0xff]
    %v175 = vld [vmem:[#allocation7 + $0xf8] sm:$0xff]
    %v176 = vld [vmem:[#allocation7 + $0x100] sm:$0xff]
    %v177 = vld [vmem:[#allocation7 + $0x108] sm:$0xff]
    %v178 = vld [vmem:[#allocation7 + $0x110] sm:$0xff]
    %v179 = vld [vmem:[#allocation7 + $0x118] sm:$0xff]
    %v180 = vld [vmem:[#allocation7 + $0x120] sm:$0xff]
    %v181 = vld [vmem:[#allocation7 + $0x128] sm:$0xff]
    %v182 = vld [vmem:[#allocation7 + $0x130] sm:$0xff]
    %v183 = vld [vmem:[#allocation7 + $0x138] sm:$0xff]
    %v184 = vld [vmem:[#allocation7 + $0x140] sm:$0xff]
    %v185 = vld [vmem:[#allocation7 + $0x148] sm:$0xff]
    %v186 = vld [vmem:[#allocation7 + $0x150] sm:$0xff]
    %v187 = vld [vmem:[#allocation7 + $0x158] sm:$0xff]
    %v188 = vld [vmem:[#allocation7 + $0x160] sm:$0xff]
    %v189 = vld [vmem:[#allocation7 + $0x168] sm:$0xff]
    %v190 = vld [vmem:[#allocation7 + $0x170] sm:$0xff]
    %v191 = vld [vmem:[#allocation7 + $0x178] sm:$0xff]
    %v192 = vld [vmem:[#allocation7 + $0x180] sm:$0xff]
    %v193 = vld [vmem:[#allocation7 + $0x188] sm:$0xff]
    %v194 = vld [vmem:[#allocation7 + $0x190] sm:$0xff]
    %v195 = vld [vmem:[#allocation7 + $0x198] sm:$0xff]
    %v196 = vld [vmem:[#allocation7 + $0x1a0] sm:$0xff]
    %v197 = vld [vmem:[#allocation7 + $0x1a8] sm:$0xff]
    %v198 = vld [vmem:[#allocation7 + $0x1b0] sm:$0xff]
    %v199 = vld [vmem:[#allocation7 + $0x1b8] sm:$0xff]
    %v200 = vld [vmem:[#allocation7 + $0x1c0] sm:$0xff]
    %v201 = vld [vmem:[#allocation7 + $0x1c8] sm:$0xff]
    %v202 = vld [vmem:[#allocation7 + $0x1d0] sm:$0xff]
    %v203 = vld [vmem:[#allocation7 + $0x1d8] sm:$0xff]
    %v204 = vld [vmem:[#allocation7 + $0x1e0] sm:$0xff]
    %v205 = vld [vmem:[#allocation7 + $0x1e8] sm:$0xff]
    %v206 = vld [vmem:[#allocation7 + $0x1f0] sm:$0xff]
    %v207 = vld [vmem:[#allocation7 + $0x1f8] sm:$0xff]
    %v208 = vld [vmem:[#allocation7 + $0x200] sm:$0xff]
    %v209 = vld [vmem:[#allocation7 + $0x208] sm:$0xff]
    %v210 = vld [vmem:[#allocation7 + $0x210] sm:$0xff]
    %v211 = vld [vmem:[#allocation7 + $0x218] sm:$0xff]
    %v212 = vld [vmem:[#allocation7 + $0x220] sm:$0xff]
    %v213 = vld [vmem:[#allocation7 + $0x228] sm:$0xff]
    %v214 = vld [vmem:[#allocation7 + $0x230] sm:$0xff]
    %v215 = vld [vmem:[#allocation7 + $0x238] sm:$0xff]
    %v216 = vld [vmem:[#allocation7 + $0x240] sm:$0xff]
    %v217 = vld [vmem:[#allocation7 + $0x248] sm:$0xff]
    %v218 = vld [vmem:[#allocation7 + $0x250] sm:$0xff]
    %v219 = vld [vmem:[#allocation7 + $0x258] sm:$0xff]
    %v220 = vld [vmem:[#allocation7 + $0x260] sm:$0xff]
    %v221 = vld [vmem:[#allocation7 + $0x268] sm:$0xff]
    %v222 = vld [vmem:[#allocation7 + $0x270] sm:$0xff]
    %v223 = vld [vmem:[#allocation7 + $0x278] sm:$0xff]
    %v224 = vld [vmem:[#allocation7 + $0x280] sm:$0xff]
    %v225 = vld [vmem:[#allocation7 + $0x288] sm:$0xff]
    %v226 = vld [vmem:[#allocation7 + $0x290] sm:$0xff]
    %v227 = vld [vmem:[#allocation7 + $0x298] sm:$0xff]
    %v228 = vld [vmem:[#allocation7 + $0x2a0] sm:$0xff]
    %v229 = vld [vmem:[#allocation7 + $0x2a8] sm:$0xff]
    %v230 = vld [vmem:[#allocation7 + $0x2b0] sm:$0xff]
    %v231 = vld [vmem:[#allocation7 + $0x2b8] sm:$0xff]
    %v232 = vld [vmem:[#allocation7 + $0x2c0] sm:$0xff]
    %v233 = vld [vmem:[#allocation7 + $0x2c8] sm:$0xff]
    %v234 = vld [vmem:[#allocation7 + $0x2d0] sm:$0xff]
    %v235 = vld [vmem:[#allocation7 + $0x2d8] sm:$0xff]
    %v236 = vld [vmem:[#allocation7 + $0x2e0] sm:$0xff]
    %v237 = vld [vmem:[#allocation7 + $0x2e8] sm:$0xff]
    %v238 = vld [vmem:[#allocation7 + $0x2f0] sm:$0xff]
    %v239 = vld [vmem:[#allocation7 + $0x2f8] sm:$0xff]
    %v240 = vlaneseq
    %v241 = vshrl.u32 %v240, 7
    %v242 = vadd.s32 %v241, 8
    %v243 = vadd.s32 %v241, 16
    %v244 = vadd.s32 %v241, 24
    %v245 = vadd.s32 %v241, 32
    %v246 = vadd.s32 %v241, 40
    %v247 = vadd.s32 %v241, 48
    %v248 = vadd.s32 %v241, 56
    %v249 = vadd.s32 %v241, 64
    %v250 = vadd.s32 %v241, 72
    %v251 = vadd.s32 %v241, 80
    %v252 = vadd.s32 %v241, 88
    %v253 = vadd.s32 %v241, 96
    %v254 = vadd.s32 %v241, 104
    %v255 = vadd.s32 %v241, 112
    %v256 = vadd.s32 %v241, 120
    %v257 = vadd.s32 %v241, 128
    %v258 = vadd.s32 %v241, 136
    %v259 = vadd.s32 %v241, 144
    %v260 = vadd.s32 %v241, 152
    %v261 = vadd.s32 %v241, 160
    %v262 = vadd.s32 %v241, 168
    %v263 = vadd.s32 %v241, 176
    %v264 = vadd.s32 %v241, 184
    %v265 = vadd.s32 %v241, 192
    %v266 = vadd.s32 %v241, 200
    %v267 = vadd.s32 %v241, 208
    %v268 = vadd.s32 %v241, 216
    %v269 = vadd.s32 %v241, 224
    %v270 = vadd.s32 %v241, 232
    %v271 = vadd.s32 %v241, 240
    %v272 = vadd.s32 %v241, 248
    %v273 = vadd.s32 %v241, 256
    %v274 = vadd.s32 %v241, 264
    %v275 = vadd.s32 %v241, 272
    %v276 = vadd.s32 %v241, 280
    %v277 = vadd.s32 %v241, 288
    %v278 = vadd.s32 %v241, 296
    %v279 = vadd.s32 %v241, 304
    %v280 = vadd.s32 %v241, 312
    %v281 = vadd.s32 %v241, 320
    %v282 = vadd.s32 %v241, 328
    %v283 = vadd.s32 %v241, 336
    %v284 = vadd.s32 %v241, 344
    %v285 = vadd.s32 %v241, 352
    %v286 = vadd.s32 %v241, 360
    %v287 = vadd.s32 %v241, 368
    %v288 = vadd.s32 %v241, 376
    %v289 = vlaneseq
    %v290 = vand.u32 %v289, 127
    %v291 = vadd.s32 %v290, 128
    %s292 = smul.u32 0, 384
    %v293 = vstv %s292
    %v294 = vadd.s32 %v241, %v293
    %v295 = vadd.s32 %v242, %v293
    %v296 = vadd.s32 %v243, %v293
    %v297 = vadd.s32 %v244, %v293
    %v298 = vadd.s32 %v245, %v293
    %v299 = vadd.s32 %v246, %v293
    %v300 = vadd.s32 %v247, %v293
    %v301 = vadd.s32 %v248, %v293
    %v302 = vadd.s32 %v249, %v293
    %v303 = vadd.s32 %v250, %v293
    %v304 = vadd.s32 %v251, %v293
    %v305 = vadd.s32 %v252, %v293
    %v306 = vadd.s32 %v253, %v293
    %v307 = vadd.s32 %v254, %v293
    %v308 = vadd.s32 %v255, %v293
    %v309 = vadd.s32 %v256, %v293
    %v310 = vadd.s32 %v257, %v293
    %v311 = vadd.s32 %v258, %v293
    %v312 = vadd.s32 %v259, %v293
    %v313 = vadd.s32 %v260, %v293
    %v314 = vadd.s32 %v261, %v293
    %v315 = vadd.s32 %v262, %v293
    %v316 = vadd.s32 %v263, %v293
    %v317 = vadd.s32 %v264, %v293
    %v318 = vadd.s32 %v265, %v293
    %v319 = vadd.s32 %v266, %v293
    %v320 = vadd.s32 %v267, %v293
    %v321 = vadd.s32 %v268, %v293
    %v322 = vadd.s32 %v269, %v293
    %v323 = vadd.s32 %v270, %v293
    %v324 = vadd.s32 %v271, %v293
    %v325 = vadd.s32 %v272, %v293
    %v326 = vadd.s32 %v273, %v293
    %v327 = vadd.s32 %v274, %v293
    %v328 = vadd.s32 %v275, %v293
    %v329 = vadd.s32 %v276, %v293
    %v330 = vadd.s32 %v277, %v293
    %v331 = vadd.s32 %v278, %v293
    %v332 = vadd.s32 %v279, %v293
    %v333 = vadd.s32 %v280, %v293
    %v334 = vadd.s32 %v281, %v293
    %v335 = vadd.s32 %v282, %v293
    %v336 = vadd.s32 %v283, %v293
    %v337 = vadd.s32 %v284, %v293
    %v338 = vadd.s32 %v285, %v293
    %v339 = vadd.s32 %v286, %v293
    %v340 = vadd.s32 %v287, %v293
    %v341 = vadd.s32 %v288, %v293
    %v342 = vmul.u32 %v294, 256
    %v343 = vmul.u32 %v295, 256
    %v344 = vmul.u32 %v296, 256
    %v345 = vmul.u32 %v297, 256
    %v346 = vmul.u32 %v298, 256
    %v347 = vmul.u32 %v299, 256
    %v348 = vmul.u32 %v300, 256
    %v349 = vmul.u32 %v301, 256
    %v350 = vmul.u32 %v302, 256
    %v351 = vmul.u32 %v303, 256
    %v352 = vmul.u32 %v304, 256
    %v353 = vmul.u32 %v305, 256
    %v354 = vmul.u32 %v306, 256
    %v355 = vmul.u32 %v307, 256
    %v356 = vmul.u32 %v308, 256
    %v357 = vmul.u32 %v309, 256
    %v358 = vmul.u32 %v310, 256
    %v359 = vmul.u32 %v311, 256
    %v360 = vmul.u32 %v312, 256
    %v361 = vmul.u32 %v313, 256
    %v362 = vmul.u32 %v314, 256
    %v363 = vmul.u32 %v315, 256
    %v364 = vmul.u32 %v316, 256
    %v365 = vmul.u32 %v317, 256
    %v366 = vmul.u32 %v318, 256
    %v367 = vmul.u32 %v319, 256
    %v368 = vmul.u32 %v320, 256
    %v369 = vmul.u32 %v321, 256
    %v370 = vmul.u32 %v322, 256
    %v371 = vmul.u32 %v323, 256
    %v372 = vmul.u32 %v324, 256
    %v373 = vmul.u32 %v325, 256
    %v374 = vmul.u32 %v326, 256
    %v375 = vmul.u32 %v327, 256
    %v376 = vmul.u32 %v328, 256
    %v377 = vmul.u32 %v329, 256
    %v378 = vmul.u32 %v330, 256
    %v379 = vmul.u32 %v331, 256
    %v380 = vmul.u32 %v332, 256
    %v381 = vmul.u32 %v333, 256
    %v382 = vmul.u32 %v334, 256
    %v383 = vmul.u32 %v335, 256
    %v384 = vmul.u32 %v336, 256
    %v385 = vmul.u32 %v337, 256
    %v386 = vmul.u32 %v338, 256
    %v387 = vmul.u32 %v339, 256
    %v388 = vmul.u32 %v340, 256
    %v389 = vmul.u32 %v341, 256
    %v390 = vadd.s32 %v342, %v290
    %v391 = vadd.s32 %v342, %v291
    %v392 = vadd.s32 %v343, %v290
    %v393 = vadd.s32 %v343, %v291
    %v394 = vadd.s32 %v344, %v290
    %v395 = vadd.s32 %v344, %v291
    %v396 = vadd.s32 %v345, %v290
    %v397 = vadd.s32 %v345, %v291
    %v398 = vadd.s32 %v346, %v290
    %v399 = vadd.s32 %v346, %v291
    %v400 = vadd.s32 %v347, %v290
    %v401 = vadd.s32 %v347, %v291
    %v402 = vadd.s32 %v348, %v290
    %v403 = vadd.s32 %v348, %v291
    %v404 = vadd.s32 %v349, %v290
    %v405 = vadd.s32 %v349, %v291
    %v406 = vadd.s32 %v350, %v290
    %v407 = vadd.s32 %v350, %v291
    %v408 = vadd.s32 %v351, %v290
    %v409 = vadd.s32 %v351, %v291
    %v410 = vadd.s32 %v352, %v290
    %v411 = vadd.s32 %v352, %v291
    %v412 = vadd.s32 %v353, %v290
    %v413 = vadd.s32 %v353, %v291
    %v414 = vadd.s32 %v354, %v290
    %v415 = vadd.s32 %v354, %v291
    %v416 = vadd.s32 %v355, %v290
    %v417 = vadd.s32 %v355, %v291
    %v418 = vadd.s32 %v356, %v290
    %v419 = vadd.s32 %v356, %v291
    %v420 = vadd.s32 %v357, %v290
    %v421 = vadd.s32 %v357, %v291
    %v422 = vadd.s32 %v358, %v290
    %v423 = vadd.s32 %v358, %v291
    %v424 = vadd.s32 %v359, %v290
    %v425 = vadd.s32 %v359, %v291
    %v426 = vadd.s32 %v360, %v290
    %v427 = vadd.s32 %v360, %v291
    %v428 = vadd.s32 %v361, %v290
    %v429 = vadd.s32 %v361, %v291
    %v430 = vadd.s32 %v362, %v290
    %v431 = vadd.s32 %v362, %v291
    %v432 = vadd.s32 %v363, %v290
    %v433 = vadd.s32 %v363, %v291
    %v434 = vadd.s32 %v364, %v290
    %v435 = vadd.s32 %v364, %v291
    %v436 = vadd.s32 %v365, %v290
    %v437 = vadd.s32 %v365, %v291
    %v438 = vadd.s32 %v366, %v290
    %v439 = vadd.s32 %v366, %v291
    %v440 = vadd.s32 %v367, %v290
    %v441 = vadd.s32 %v367, %v291
    %v442 = vadd.s32 %v368, %v290
    %v443 = vadd.s32 %v368, %v291
    %v444 = vadd.s32 %v369, %v290
    %v445 = vadd.s32 %v369, %v291
    %v446 = vadd.s32 %v370, %v290
    %v447 = vadd.s32 %v370, %v291
    %v448 = vadd.s32 %v371, %v290
    %v449 = vadd.s32 %v371, %v291
    %v450 = vadd.s32 %v372, %v290
    %v451 = vadd.s32 %v372, %v291
    %v452 = vadd.s32 %v373, %v290
    %v453 = vadd.s32 %v373, %v291
    %v454 = vadd.s32 %v374, %v290
    %v455 = vadd.s32 %v374, %v291
    %v456 = vadd.s32 %v375, %v290
    %v457 = vadd.s32 %v375, %v291
    %v458 = vadd.s32 %v376, %v290
    %v459 = vadd.s32 %v376, %v291
    %v460 = vadd.s32 %v377, %v290
    %v461 = vadd.s32 %v377, %v291
    %v462 = vadd.s32 %v378, %v290
    %v463 = vadd.s32 %v378, %v291
    %v464 = vadd.s32 %v379, %v290
    %v465 = vadd.s32 %v379, %v291
    %v466 = vadd.s32 %v380, %v290
    %v467 = vadd.s32 %v380, %v291
    %v468 = vadd.s32 %v381, %v290
    %v469 = vadd.s32 %v381, %v291
    %v470 = vadd.s32 %v382, %v290
    %v471 = vadd.s32 %v382, %v291
    %v472 = vadd.s32 %v383, %v290
    %v473 = vadd.s32 %v383, %v291
    %v474 = vadd.s32 %v384, %v290
    %v475 = vadd.s32 %v384, %v291
    %v476 = vadd.s32 %v385, %v290
    %v477 = vadd.s32 %v385, %v291
    %v478 = vadd.s32 %v386, %v290
    %v479 = vadd.s32 %v386, %v291
    %v480 = vadd.s32 %v387, %v290
    %v481 = vadd.s32 %v387, %v291
    %v482 = vadd.s32 %v388, %v290
    %v483 = vadd.s32 %v388, %v291
    %v484 = vadd.s32 %v389, %v290
    %v485 = vadd.s32 %v389, %v291
    %s486 = sld [smem:[#allocation3]]
    %s487 = smul.u32 %s486, 2654435769
    %v488 = vstv %s487
    %v489 = vadd.s32 %v390, %v488
    %v490 = vadd.s32 %v391, %v488
    %v491 = vadd.s32 %v392, %v488
    %v492 = vadd.s32 %v393, %v488
    %v493 = vadd.s32 %v394, %v488
    %v494 = vadd.s32 %v395, %v488
    %v495 = vadd.s32 %v396, %v488
    %v496 = vadd.s32 %v397, %v488
    %v497 = vadd.s32 %v398, %v488
    %v498 = vadd.s32 %v399, %v488
    %v499 = vadd.s32 %v400, %v488
    %v500 = vadd.s32 %v401, %v488
    %v501 = vadd.s32 %v402, %v488
    %v502 = vadd.s32 %v403, %v488
    %v503 = vadd.s32 %v404, %v488
    %v504 = vadd.s32 %v405, %v488
    %v505 = vadd.s32 %v406, %v488
    %v506 = vadd.s32 %v407, %v488
    %v507 = vadd.s32 %v408, %v488
    %v508 = vadd.s32 %v409, %v488
    %v509 = vadd.s32 %v410, %v488
    %v510 = vadd.s32 %v411, %v488
    %v511 = vadd.s32 %v412, %v488
    %v512 = vadd.s32 %v413, %v488
    %v513 = vadd.s32 %v414, %v488
    %v514 = vadd.s32 %v415, %v488
    %v515 = vadd.s32 %v416, %v488
    %v516 = vadd.s32 %v417, %v488
    %v517 = vadd.s32 %v418, %v488
    %v518 = vadd.s32 %v419, %v488
    %v519 = vadd.s32 %v420, %v488
    %v520 = vadd.s32 %v421, %v488
    %v521 = vadd.s32 %v422, %v488
    %v522 = vadd.s32 %v423, %v488
    %v523 = vadd.s32 %v424, %v488
    %v524 = vadd.s32 %v425, %v488
    %v525 = vadd.s32 %v426, %v488
    %v526 = vadd.s32 %v427, %v488
    %v527 = vadd.s32 %v428, %v488
    %v528 = vadd.s32 %v429, %v488
    %v529 = vadd.s32 %v430, %v488
    %v530 = vadd.s32 %v431, %v488
    %v531 = vadd.s32 %v432, %v488
    %v532 = vadd.s32 %v433, %v488
    %v533 = vadd.s32 %v434, %v488
    %v534 = vadd.s32 %v435, %v488
    %v535 = vadd.s32 %v436, %v488
    %v536 = vadd.s32 %v437, %v488
    %v537 = vadd.s32 %v438, %v488
    %v538 = vadd.s32 %v439, %v488
    %v539 = vadd.s32 %v440, %v488
    %v540 = vadd.s32 %v441, %v488
    %v541 = vadd.s32 %v442, %v488
    %v542 = vadd.s32 %v443, %v488
    %v543 = vadd.s32 %v444, %v488
    %v544 = vadd.s32 %v445, %v488
    %v545 = vadd.s32 %v446, %v488
    %v546 = vadd.s32 %v447, %v488
    %v547 = vadd.s32 %v448, %v488
    %v548 = vadd.s32 %v449, %v488
    %v549 = vadd.s32 %v450, %v488
    %v550 = vadd.s32 %v451, %v488
    %v551 = vadd.s32 %v452, %v488
    %v552 = vadd.s32 %v453, %v488
    %v553 = vadd.s32 %v454, %v488
    %v554 = vadd.s32 %v455, %v488
    %v555 = vadd.s32 %v456, %v488
    %v556 = vadd.s32 %v457, %v488
    %v557 = vadd.s32 %v458, %v488
    %v558 = vadd.s32 %v459, %v488
    %v559 = vadd.s32 %v460, %v488
    %v560 = vadd.s32 %v461, %v488
    %v561 = vadd.s32 %v462, %v488
    %v562 = vadd.s32 %v463, %v488
    %v563 = vadd.s32 %v464, %v488
    %v564 = vadd.s32 %v465, %v488
    %v565 = vadd.s32 %v466, %v488
    %v566 = vadd.s32 %v467, %v488
    %v567 = vadd.s32 %v468, %v488
    %v568 = vadd.s32 %v469, %v488
    %v569 = vadd.s32 %v470, %v488
    %v570 = vadd.s32 %v471, %v488
    %v571 = vadd.s32 %v472, %v488
    %v572 = vadd.s32 %v473, %v488
    %v573 = vadd.s32 %v474, %v488
    %v574 = vadd.s32 %v475, %v488
    %v575 = vadd.s32 %v476, %v488
    %v576 = vadd.s32 %v477, %v488
    %v577 = vadd.s32 %v478, %v488
    %v578 = vadd.s32 %v479, %v488
    %v579 = vadd.s32 %v480, %v488
    %v580 = vadd.s32 %v481, %v488
    %v581 = vadd.s32 %v482, %v488
    %v582 = vadd.s32 %v483, %v488
    %v583 = vadd.s32 %v484, %v488
    %v584 = vadd.s32 %v485, %v488
    %v585 = vshrl.u32 %v489, 16
    %v586 = vshrl.u32 %v490, 16
    %v587 = vshrl.u32 %v491, 16
    %v588 = vshrl.u32 %v492, 16
    %v589 = vshrl.u32 %v493, 16
    %v590 = vshrl.u32 %v494, 16
    %v591 = vshrl.u32 %v495, 16
    %v592 = vshrl.u32 %v496, 16
    %v593 = vshrl.u32 %v497, 16
    %v594 = vshrl.u32 %v498, 16
    %v595 = vshrl.u32 %v499, 16
    %v596 = vshrl.u32 %v500, 16
    %v597 = vshrl.u32 %v501, 16
    %v598 = vshrl.u32 %v502, 16
    %v599 = vshrl.u32 %v503, 16
    %v600 = vshrl.u32 %v504, 16
    %v601 = vshrl.u32 %v505, 16
    %v602 = vshrl.u32 %v506, 16
    %v603 = vshrl.u32 %v507, 16
    %v604 = vshrl.u32 %v508, 16
    %v605 = vshrl.u32 %v509, 16
    %v606 = vshrl.u32 %v510, 16
    %v607 = vshrl.u32 %v511, 16
    %v608 = vshrl.u32 %v512, 16
    %v609 = vshrl.u32 %v513, 16
    %v610 = vshrl.u32 %v514, 16
    %v611 = vshrl.u32 %v515, 16
    %v612 = vshrl.u32 %v516, 16
    %v613 = vshrl.u32 %v517, 16
    %v614 = vshrl.u32 %v518, 16
    %v615 = vshrl.u32 %v519, 16
    %v616 = vshrl.u32 %v520, 16
    %v617 = vshrl.u32 %v521, 16
    %v618 = vshrl.u32 %v522, 16
    %v619 = vshrl.u32 %v523, 16
    %v620 = vshrl.u32 %v524, 16
    %v621 = vshrl.u32 %v525, 16
    %v622 = vshrl.u32 %v526, 16
    %v623 = vshrl.u32 %v527, 16
    %v624 = vshrl.u32 %v528, 16
    %v625 = vshrl.u32 %v529, 16
    %v626 = vshrl.u32 %v530, 16
    %v627 = vshrl.u32 %v531, 16
    %v628 = vshrl.u32 %v532, 16
    %v629 = vshrl.u32 %v533, 16
    %v630 = vshrl.u32 %v534, 16
    %v631 = vshrl.u32 %v535, 16
    %v632 = vshrl.u32 %v536, 16
    %v633 = vshrl.u32 %v537, 16
    %v634 = vshrl.u32 %v538, 16
    %v635 = vshrl.u32 %v539, 16
    %v636 = vshrl.u32 %v540, 16
    %v637 = vshrl.u32 %v541, 16
    %v638 = vshrl.u32 %v542, 16
    %v639 = vshrl.u32 %v543, 16
    %v640 = vshrl.u32 %v544, 16
    %v641 = vshrl.u32 %v545, 16
    %v642 = vshrl.u32 %v546, 16
    %v643 = vshrl.u32 %v547, 16
    %v644 = vshrl.u32 %v548, 16
    %v645 = vshrl.u32 %v549, 16
    %v646 = vshrl.u32 %v550, 16
    %v647 = vshrl.u32 %v551, 16
    %v648 = vshrl.u32 %v552, 16
    %v649 = vshrl.u32 %v553, 16
    %v650 = vshrl.u32 %v554, 16
    %v651 = vshrl.u32 %v555, 16
    %v652 = vshrl.u32 %v556, 16
    %v653 = vshrl.u32 %v557, 16
    %v654 = vshrl.u32 %v558, 16
    %v655 = vshrl.u32 %v559, 16
    %v656 = vshrl.u32 %v560, 16
    %v657 = vshrl.u32 %v561, 16
    %v658 = vshrl.u32 %v562, 16
    %v659 = vshrl.u32 %v563, 16
    %v660 = vshrl.u32 %v564, 16
    %v661 = vshrl.u32 %v565, 16
    %v662 = vshrl.u32 %v566, 16
    %v663 = vshrl.u32 %v567, 16
    %v664 = vshrl.u32 %v568, 16
    %v665 = vshrl.u32 %v569, 16
    %v666 = vshrl.u32 %v570, 16
    %v667 = vshrl.u32 %v571, 16
    %v668 = vshrl.u32 %v572, 16
    %v669 = vshrl.u32 %v573, 16
    %v670 = vshrl.u32 %v574, 16
    %v671 = vshrl.u32 %v575, 16
    %v672 = vshrl.u32 %v576, 16
    %v673 = vshrl.u32 %v577, 16
    %v674 = vshrl.u32 %v578, 16
    %v675 = vshrl.u32 %v579, 16
    %v676 = vshrl.u32 %v580, 16
    %v677 = vshrl.u32 %v581, 16
    %v678 = vshrl.u32 %v582, 16
    %v679 = vshrl.u32 %v583, 16
    %v680 = vshrl.u32 %v584, 16
    %v681 = vxor.u32 %v489, %v585
    %v682 = vxor.u32 %v490, %v586
    %v683 = vxor.u32 %v491, %v587
    %v684 = vxor.u32 %v492, %v588
    %v685 = vxor.u32 %v493, %v589
    %v686 = vxor.u32 %v494, %v590
    %v687 = vxor.u32 %v495, %v591
    %v688 = vxor.u32 %v496, %v592
    %v689 = vxor.u32 %v497, %v593
    %v690 = vxor.u32 %v498, %v594
    %v691 = vxor.u32 %v499, %v595
    %v692 = vxor.u32 %v500, %v596
    %v693 = vxor.u32 %v501, %v597
    %v694 = vxor.u32 %v502, %v598
    %v695 = vxor.u32 %v503, %v599
    %v696 = vxor.u32 %v504, %v600
    %v697 = vxor.u32 %v505, %v601
    %v698 = vxor.u32 %v506, %v602
    %v699 = vxor.u32 %v507, %v603
    %v700 = vxor.u32 %v508, %v604
    %v701 = vxor.u32 %v509, %v605
    %v702 = vxor.u32 %v510, %v606
    %v703 = vxor.u32 %v511, %v607
    %v704 = vxor.u32 %v512, %v608
    %v705 = vxor.u32 %v513, %v609
    %v706 = vxor.u32 %v514, %v610
    %v707 = vxor.u32 %v515, %v611
    %v708 = vxor.u32 %v516, %v612
    %v709 = vxor.u32 %v517, %v613
    %v710 = vxor.u32 %v518, %v614
    %v711 = vxor.u32 %v519, %v615
    %v712 = vxor.u32 %v520, %v616
    %v713 = vxor.u32 %v521, %v617
    %v714 = vxor.u32 %v522, %v618
    %v715 = vxor.u32 %v523, %v619
    %v716 = vxor.u32 %v524, %v620
    %v717 = vxor.u32 %v525, %v621
    %v718 = vxor.u32 %v526, %v622
    %v719 = vxor.u32 %v527, %v623
    %v720 = vxor.u32 %v528, %v624
    %v721 = vxor.u32 %v529, %v625
    %v722 = vxor.u32 %v530, %v626
    %v723 = vxor.u32 %v531, %v627
    %v724 = vxor.u32 %v532, %v628
    %v725 = vxor.u32 %v533, %v629
    %v726 = vxor.u32 %v534, %v630
    %v727 = vxor.u32 %v535, %v631
    %v728 = vxor.u32 %v536, %v632
    %v729 = vxor.u32 %v537, %v633
    %v730 = vxor.u32 %v538, %v634
    %v731 = vxor.u32 %v539, %v635
    %v732 = vxor.u32 %v540, %v636
    %v733 = vxor.u32 %v541, %v637
    %v734 = vxor.u32 %v542, %v638
    %v735 = vxor.u32 %v543, %v639
    %v736 = vxor.u32 %v544, %v640
    %v737 = vxor.u32 %v545, %v641
    %v738 = vxor.u32 %v546, %v642
    %v739 = vxor.u32 %v547, %v643
    %v740 = vxor.u32 %v548, %v644
    %v741 = vxor.u32 %v549, %v645
    %v742 = vxor.u32 %v550, %v646
    %v743 = vxor.u32 %v551, %v647
    %v744 = vxor.u32 %v552, %v648
    %v745 = vxor.u32 %v553, %v649
    %v746 = vxor.u32 %v554, %v650
    %v747 = vxor.u32 %v555, %v651
    %v748 = vxor.u32 %v556, %v652
    %v749 = vxor.u32 %v557, %v653
    %v750 = vxor.u32 %v558, %v654
    %v751 = vxor.u32 %v559, %v655
    %v752 = vxor.u32 %v560, %v656
    %v753 = vxor.u32 %v561, %v657
    %v754 = vxor.u32 %v562, %v658
    %v755 = vxor.u32 %v563, %v659
    %v756 = vxor.u32 %v564, %v660
    %v757 = vxor.u32 %v565, %v661
    %v758 = vxor.u32 %v566, %v662
    %v759 = vxor.u32 %v567, %v663
    %v760 = vxor.u32 %v568, %v664
    %v761 = vxor.u32 %v569, %v665
    %v762 = vxor.u32 %v570, %v666
    %v763 = vxor.u32 %v571, %v667
    %v764 = vxor.u32 %v572, %v668
    %v765 = vxor.u32 %v573, %v669
    %v766 = vxor.u32 %v574, %v670
    %v767 = vxor.u32 %v575, %v671
    %v768 = vxor.u32 %v576, %v672
    %v769 = vxor.u32 %v577, %v673
    %v770 = vxor.u32 %v578, %v674
    %v771 = vxor.u32 %v579, %v675
    %v772 = vxor.u32 %v580, %v676
    %v773 = vxor.u32 %v581, %v677
    %v774 = vxor.u32 %v582, %v678
    %v775 = vxor.u32 %v583, %v679
    %v776 = vxor.u32 %v584, %v680
    %v777 = vmul.u32 %v681, 2146121005
    %v778 = vmul.u32 %v682, 2146121005
    %v779 = vmul.u32 %v683, 2146121005
    %v780 = vmul.u32 %v684, 2146121005
    %v781 = vmul.u32 %v685, 2146121005
    %v782 = vmul.u32 %v686, 2146121005
    %v783 = vmul.u32 %v687, 2146121005
    %v784 = vmul.u32 %v688, 2146121005
    %v785 = vmul.u32 %v689, 2146121005
    %v786 = vmul.u32 %v690, 2146121005
    %v787 = vmul.u32 %v691, 2146121005
    %v788 = vmul.u32 %v692, 2146121005
    %v789 = vmul.u32 %v693, 2146121005
    %v790 = vmul.u32 %v694, 2146121005
    %v791 = vmul.u32 %v695, 2146121005
    %v792 = vmul.u32 %v696, 2146121005
    %v793 = vmul.u32 %v697, 2146121005
    %v794 = vmul.u32 %v698, 2146121005
    %v795 = vmul.u32 %v699, 2146121005
    %v796 = vmul.u32 %v700, 2146121005
    %v797 = vmul.u32 %v701, 2146121005
    %v798 = vmul.u32 %v702, 2146121005
    %v799 = vmul.u32 %v703, 2146121005
    %v800 = vmul.u32 %v704, 2146121005
    %v801 = vmul.u32 %v705, 2146121005
    %v802 = vmul.u32 %v706, 2146121005
    %v803 = vmul.u32 %v707, 2146121005
    %v804 = vmul.u32 %v708, 2146121005
    %v805 = vmul.u32 %v709, 2146121005
    %v806 = vmul.u32 %v710, 2146121005
    %v807 = vmul.u32 %v711, 2146121005
    %v808 = vmul.u32 %v712, 2146121005
    %v809 = vmul.u32 %v713, 2146121005
    %v810 = vmul.u32 %v714, 2146121005
    %v811 = vmul.u32 %v715, 2146121005
    %v812 = vmul.u32 %v716, 2146121005
    %v813 = vmul.u32 %v717, 2146121005
    %v814 = vmul.u32 %v718, 2146121005
    %v815 = vmul.u32 %v719, 2146121005
    %v816 = vmul.u32 %v720, 2146121005
    %v817 = vmul.u32 %v721, 2146121005
    %v818 = vmul.u32 %v722, 2146121005
    %v819 = vmul.u32 %v723, 2146121005
    %v820 = vmul.u32 %v724, 2146121005
    %v821 = vmul.u32 %v725, 2146121005
    %v822 = vmul.u32 %v726, 2146121005
    %v823 = vmul.u32 %v727, 2146121005
    %v824 = vmul.u32 %v728, 2146121005
    %v825 = vmul.u32 %v729, 2146121005
    %v826 = vmul.u32 %v730, 2146121005
    %v827 = vmul.u32 %v731, 2146121005
    %v828 = vmul.u32 %v732, 2146121005
    %v829 = vmul.u32 %v733, 2146121005
    %v830 = vmul.u32 %v734, 2146121005
    %v831 = vmul.u32 %v735, 2146121005
    %v832 = vmul.u32 %v736, 2146121005
    %v833 = vmul.u32 %v737, 2146121005
    %v834 = vmul.u32 %v738, 2146121005
    %v835 = vmul.u32 %v739, 2146121005
    %v836 = vmul.u32 %v740, 2146121005
    %v837 = vmul.u32 %v741, 2146121005
    %v838 = vmul.u32 %v742, 2146121005
    %v839 = vmul.u32 %v743, 2146121005
    %v840 = vmul.u32 %v744, 2146121005
    %v841 = vmul.u32 %v745, 2146121005
    %v842 = vmul.u32 %v746, 2146121005
    %v843 = vmul.u32 %v747, 2146121005
    %v844 = vmul.u32 %v748, 2146121005
    %v845 = vmul.u32 %v749, 2146121005
    %v846 = vmul.u32 %v750, 2146121005
    %v847 = vmul.u32 %v751, 2146121005
    %v848 = vmul.u32 %v752, 2146121005
    %v849 = vmul.u32 %v753, 2146121005
    %v850 = vmul.u32 %v754, 2146121005
    %v851 = vmul.u32 %v755, 2146121005
    %v852 = vmul.u32 %v756, 2146121005
    %v853 = vmul.u32 %v757, 2146121005
    %v854 = vmul.u32 %v758, 2146121005
    %v855 = vmul.u32 %v759, 2146121005
    %v856 = vmul.u32 %v760, 2146121005
    %v857 = vmul.u32 %v761, 2146121005
    %v858 = vmul.u32 %v762, 2146121005
    %v859 = vmul.u32 %v763, 2146121005
    %v860 = vmul.u32 %v764, 2146121005
    %v861 = vmul.u32 %v765, 2146121005
    %v862 = vmul.u32 %v766, 2146121005
    %v863 = vmul.u32 %v767, 2146121005
    %v864 = vmul.u32 %v768, 2146121005
    %v865 = vmul.u32 %v769, 2146121005
    %v866 = vmul.u32 %v770, 2146121005
    %v867 = vmul.u32 %v771, 2146121005
    %v868 = vmul.u32 %v772, 2146121005
    %v869 = vmul.u32 %v773, 2146121005
    %v870 = vmul.u32 %v774, 2146121005
    %v871 = vmul.u32 %v775, 2146121005
    %v872 = vmul.u32 %v776, 2146121005
    %v873 = vshrl.u32 %v777, 15
    %v874 = vshrl.u32 %v778, 15
    %v875 = vshrl.u32 %v779, 15
    %v876 = vshrl.u32 %v780, 15
    %v877 = vshrl.u32 %v781, 15
    %v878 = vshrl.u32 %v782, 15
    %v879 = vshrl.u32 %v783, 15
    %v880 = vshrl.u32 %v784, 15
    %v881 = vshrl.u32 %v785, 15
    %v882 = vshrl.u32 %v786, 15
    %v883 = vshrl.u32 %v787, 15
    %v884 = vshrl.u32 %v788, 15
    %v885 = vshrl.u32 %v789, 15
    %v886 = vshrl.u32 %v790, 15
    %v887 = vshrl.u32 %v791, 15
    %v888 = vshrl.u32 %v792, 15
    %v889 = vshrl.u32 %v793, 15
    %v890 = vshrl.u32 %v794, 15
    %v891 = vshrl.u32 %v795, 15
    %v892 = vshrl.u32 %v796, 15
    %v893 = vshrl.u32 %v797, 15
    %v894 = vshrl.u32 %v798, 15
    %v895 = vshrl.u32 %v799, 15
    %v896 = vshrl.u32 %v800, 15
    %v897 = vshrl.u32 %v801, 15
    %v898 = vshrl.u32 %v802, 15
    %v899 = vshrl.u32 %v803, 15
    %v900 = vshrl.u32 %v804, 15
    %v901 = vshrl.u32 %v805, 15
    %v902 = vshrl.u32 %v806, 15
    %v903 = vshrl.u32 %v807, 15
    %v904 = vshrl.u32 %v808, 15
    %v905 = vshrl.u32 %v809, 15
    %v906 = vshrl.u32 %v810, 15
    %v907 = vshrl.u32 %v811, 15
    %v908 = vshrl.u32 %v812, 15
    %v909 = vshrl.u32 %v813, 15
    %v910 = vshrl.u32 %v814, 15
    %v911 = vshrl.u32 %v815, 15
    %v912 = vshrl.u32 %v816, 15
    %v913 = vshrl.u32 %v817, 15
    %v914 = vshrl.u32 %v818, 15
    %v915 = vshrl.u32 %v819, 15
    %v916 = vshrl.u32 %v820, 15
    %v917 = vshrl.u32 %v821, 15
    %v918 = vshrl.u32 %v822, 15
    %v919 = vshrl.u32 %v823, 15
    %v920 = vshrl.u32 %v824, 15
    %v921 = vshrl.u32 %v825, 15
    %v922 = vshrl.u32 %v826, 15
    %v923 = vshrl.u32 %v827, 15
    %v924 = vshrl.u32 %v828, 15
    %v925 = vshrl.u32 %v829, 15
    %v926 = vshrl.u32 %v830, 15
    %v927 = vshrl.u32 %v831, 15
    %v928 = vshrl.u32 %v832, 15
    %v929 = vshrl.u32 %v833, 15
    %v930 = vshrl.u32 %v834, 15
    %v931 = vshrl.u32 %v835, 15
    %v932 = vshrl.u32 %v836, 15
    %v933 = vshrl.u32 %v837, 15
    %v934 = vshrl.u32 %v838, 15
    %v935 = vshrl.u32 %v839, 15
    %v936 = vshrl.u32 %v840, 15
    %v937 = vshrl.u32 %v841, 15
    %v938 = vshrl.u32 %v842, 15
    %v939 = vshrl.u32 %v843, 15
    %v940 = vshrl.u32 %v844, 15
    %v941 = vshrl.u32 %v845, 15
    %v942 = vshrl.u32 %v846, 15
    %v943 = vshrl.u32 %v847, 15
    %v944 = vshrl.u32 %v848, 15
    %v945 = vshrl.u32 %v849, 15
    %v946 = vshrl.u32 %v850, 15
    %v947 = vshrl.u32 %v851, 15
    %v948 = vshrl.u32 %v852, 15
    %v949 = vshrl.u32 %v853, 15
    %v950 = vshrl.u32 %v854, 15
    %v951 = vshrl.u32 %v855, 15
    %v952 = vshrl.u32 %v856, 15
    %v953 = vshrl.u32 %v857, 15
    %v954 = vshrl.u32 %v858, 15
    %v955 = vshrl.u32 %v859, 15
    %v956 = vshrl.u32 %v860, 15
    %v957 = vshrl.u32 %v861, 15
    %v958 = vshrl.u32 %v862, 15
    %v959 = vshrl.u32 %v863, 15
    %v960 = vshrl.u32 %v864, 15
    %v961 = vshrl.u32 %v865, 15
    %v962 = vshrl.u32 %v866, 15
    %v963 = vshrl.u32 %v867, 15
    %v964 = vshrl.u32 %v868, 15
    %v965 = vshrl.u32 %v869, 15
    %v966 = vshrl.u32 %v870, 15
    %v967 = vshrl.u32 %v871, 15
    %v968 = vshrl.u32 %v872, 15
    %v969 = vxor.u32 %v777, %v873
    %v970 = vxor.u32 %v778, %v874
    %v971 = vxor.u32 %v779, %v875
    %v972 = vxor.u32 %v780, %v876
    %v973 = vxor.u32 %v781, %v877
    %v974 = vxor.u32 %v782, %v878
    %v975 = vxor.u32 %v783, %v879
    %v976 = vxor.u32 %v784, %v880
    %v977 = vxor.u32 %v785, %v881
    %v978 = vxor.u32 %v786, %v882
    %v979 = vxor.u32 %v787, %v883
    %v980 = vxor.u32 %v788, %v884
    %v981 = vxor.u32 %v789, %v885
    %v982 = vxor.u32 %v790, %v886
    %v983 = vxor.u32 %v791, %v887
    %v984 = vxor.u32 %v792, %v888
    %v985 = vxor.u32 %v793, %v889
    %v986 = vxor.u32 %v794, %v890
    %v987 = vxor.u32 %v795, %v891
    %v988 = vxor.u32 %v796, %v892
    %v989 = vxor.u32 %v797, %v893
    %v990 = vxor.u32 %v798, %v894
    %v991 = vxor.u32 %v799, %v895
    %v992 = vxor.u32 %v800, %v896
    %v993 = vxor.u32 %v801, %v897
    %v994 = vxor.u32 %v802, %v898
    %v995 = vxor.u32 %v803, %v899
    %v996 = vxor.u32 %v804, %v900
    %v997 = vxor.u32 %v805, %v901
    %v998 = vxor.u32 %v806, %v902
    %v999 = vxor.u32 %v807, %v903
    %v1000 = vxor.u32 %v808, %v904
    %v1001 = vxor.u32 %v809, %v905
    %v1002 = vxor.u32 %v810, %v906
    %v1003 = vxor.u32 %v811, %v907
    %v1004 = vxor.u32 %v812, %v908
    %v1005 = vxor.u32 %v813, %v909
    %v1006 = vxor.u32 %v814, %v910
    %v1007 = vxor.u32 %v815, %v911
    %v1008 = vxor.u32 %v816, %v912
    %v1009 = vxor.u32 %v817, %v913
    %v1010 = vxor.u32 %v818, %v914
    %v1011 = vxor.u32 %v819, %v915
    %v1012 = vxor.u32 %v820, %v916
    %v1013 = vxor.u32 %v821, %v917
    %v1014 = vxor.u32 %v822, %v918
    %v1015 = vxor.u32 %v823, %v919
    %v1016 = vxor.u32 %v824, %v920
    %v1017 = vxor.u32 %v825, %v921
    %v1018 = vxor.u32 %v826, %v922
    %v1019 = vxor.u32 %v827, %v923
    %v1020 = vxor.u32 %v828, %v924
    %v1021 = vxor.u32 %v829, %v925
    %v1022 = vxor.u32 %v830, %v926
    %v1023 = vxor.u32 %v831, %v927
    %v1024 = vxor.u32 %v832, %v928
    %v1025 = vxor.u32 %v833, %v929
    %v1026 = vxor.u32 %v834, %v930
    %v1027 = vxor.u32 %v835, %v931
    %v1028 = vxor.u32 %v836, %v932
    %v1029 = vxor.u32 %v837, %v933
    %v1030 = vxor.u32 %v838, %v934
    %v1031 = vxor.u32 %v839, %v935
    %v1032 = vxor.u32 %v840, %v936
    %v1033 = vxor.u32 %v841, %v937
    %v1034 = vxor.u32 %v842, %v938
    %v1035 = vxor.u32 %v843, %v939
    %v1036 = vxor.u32 %v844, %v940
    %v1037 = vxor.u32 %v845, %v941
    %v1038 = vxor.u32 %v846, %v942
    %v1039 = vxor.u32 %v847, %v943
    %v1040 = vxor.u32 %v848, %v944
    %v1041 = vxor.u32 %v849, %v945
    %v1042 = vxor.u32 %v850, %v946
    %v1043 = vxor.u32 %v851, %v947
    %v1044 = vxor.u32 %v852, %v948
    %v1045 = vxor.u32 %v853, %v949
    %v1046 = vxor.u32 %v854, %v950
    %v1047 = vxor.u32 %v855, %v951
    %v1048 = vxor.u32 %v856, %v952
    %v1049 = vxor.u32 %v857, %v953
    %v1050 = vxor.u32 %v858, %v954
    %v1051 = vxor.u32 %v859, %v955
    %v1052 = vxor.u32 %v860, %v956
    %v1053 = vxor.u32 %v861, %v957
    %v1054 = vxor.u32 %v862, %v958
    %v1055 = vxor.u32 %v863, %v959
    %v1056 = vxor.u32 %v864, %v960
    %v1057 = vxor.u32 %v865, %v961
    %v1058 = vxor.u32 %v866, %v962
    %v1059 = vxor.u32 %v867, %v963
    %v1060 = vxor.u32 %v868, %v964
    %v1061 = vxor.u32 %v869, %v965
    %v1062 = vxor.u32 %v870, %v966
    %v1063 = vxor.u32 %v871, %v967
    %v1064 = vxor.u32 %v872, %v968
    %v1065 = vmul.u32 %v969, 2221713035
    %v1066 = vmul.u32 %v970, 2221713035
    %v1067 = vmul.u32 %v971, 2221713035
    %v1068 = vmul.u32 %v972, 2221713035
    %v1069 = vmul.u32 %v973, 2221713035
    %v1070 = vmul.u32 %v974, 2221713035
    %v1071 = vmul.u32 %v975, 2221713035
    %v1072 = vmul.u32 %v976, 2221713035
    %v1073 = vmul.u32 %v977, 2221713035
    %v1074 = vmul.u32 %v978, 2221713035
    %v1075 = vmul.u32 %v979, 2221713035
    %v1076 = vmul.u32 %v980, 2221713035
    %v1077 = vmul.u32 %v981, 2221713035
    %v1078 = vmul.u32 %v982, 2221713035
    %v1079 = vmul.u32 %v983, 2221713035
    %v1080 = vmul.u32 %v984, 2221713035
    %v1081 = vmul.u32 %v985, 2221713035
    %v1082 = vmul.u32 %v986, 2221713035
    %v1083 = vmul.u32 %v987, 2221713035
    %v1084 = vmul.u32 %v988, 2221713035
    %v1085 = vmul.u32 %v989, 2221713035
    %v1086 = vmul.u32 %v990, 2221713035
    %v1087 = vmul.u32 %v991, 2221713035
    %v1088 = vmul.u32 %v992, 2221713035
    %v1089 = vmul.u32 %v993, 2221713035
    %v1090 = vmul.u32 %v994, 2221713035
    %v1091 = vmul.u32 %v995, 2221713035
    %v1092 = vmul.u32 %v996, 2221713035
    %v1093 = vmul.u32 %v997, 2221713035
    %v1094 = vmul.u32 %v998, 2221713035
    %v1095 = vmul.u32 %v999, 2221713035
    %v1096 = vmul.u32 %v1000, 2221713035
    %v1097 = vmul.u32 %v1001, 2221713035
    %v1098 = vmul.u32 %v1002, 2221713035
    %v1099 = vmul.u32 %v1003, 2221713035
    %v1100 = vmul.u32 %v1004, 2221713035
    %v1101 = vmul.u32 %v1005, 2221713035
    %v1102 = vmul.u32 %v1006, 2221713035
    %v1103 = vmul.u32 %v1007, 2221713035
    %v1104 = vmul.u32 %v1008, 2221713035
    %v1105 = vmul.u32 %v1009, 2221713035
    %v1106 = vmul.u32 %v1010, 2221713035
    %v1107 = vmul.u32 %v1011, 2221713035
    %v1108 = vmul.u32 %v1012, 2221713035
    %v1109 = vmul.u32 %v1013, 2221713035
    %v1110 = vmul.u32 %v1014, 2221713035
    %v1111 = vmul.u32 %v1015, 2221713035
    %v1112 = vmul.u32 %v1016, 2221713035
    %v1113 = vmul.u32 %v1017, 2221713035
    %v1114 = vmul.u32 %v1018, 2221713035
    %v1115 = vmul.u32 %v1019, 2221713035
    %v1116 = vmul.u32 %v1020, 2221713035
    %v1117 = vmul.u32 %v1021, 2221713035
    %v1118 = vmul.u32 %v1022, 2221713035
    %v1119 = vmul.u32 %v1023, 2221713035
    %v1120 = vmul.u32 %v1024, 2221713035
    %v1121 = vmul.u32 %v1025, 2221713035
    %v1122 = vmul.u32 %v1026, 2221713035
    %v1123 = vmul.u32 %v1027, 2221713035
    %v1124 = vmul.u32 %v1028, 2221713035
    %v1125 = vmul.u32 %v1029, 2221713035
    %v1126 = vmul.u32 %v1030, 2221713035
    %v1127 = vmul.u32 %v1031, 2221713035
    %v1128 = vmul.u32 %v1032, 2221713035
    %v1129 = vmul.u32 %v1033, 2221713035
    %v1130 = vmul.u32 %v1034, 2221713035
    %v1131 = vmul.u32 %v1035, 2221713035
    %v1132 = vmul.u32 %v1036, 2221713035
    %v1133 = vmul.u32 %v1037, 2221713035
    %v1134 = vmul.u32 %v1038, 2221713035
    %v1135 = vmul.u32 %v1039, 2221713035
    %v1136 = vmul.u32 %v1040, 2221713035
    %v1137 = vmul.u32 %v1041, 2221713035
    %v1138 = vmul.u32 %v1042, 2221713035
    %v1139 = vmul.u32 %v1043, 2221713035
    %v1140 = vmul.u32 %v1044, 2221713035
    %v1141 = vmul.u32 %v1045, 2221713035
    %v1142 = vmul.u32 %v1046, 2221713035
    %v1143 = vmul.u32 %v1047, 2221713035
    %v1144 = vmul.u32 %v1048, 2221713035
    %v1145 = vmul.u32 %v1049, 2221713035
    %v1146 = vmul.u32 %v1050, 2221713035
    %v1147 = vmul.u32 %v1051, 2221713035
    %v1148 = vmul.u32 %v1052, 2221713035
    %v1149 = vmul.u32 %v1053, 2221713035
    %v1150 = vmul.u32 %v1054, 2221713035
    %v1151 = vmul.u32 %v1055, 2221713035
    %v1152 = vmul.u32 %v1056, 2221713035
    %v1153 = vmul.u32 %v1057, 2221713035
    %v1154 = vmul.u32 %v1058, 2221713035
    %v1155 = vmul.u32 %v1059, 2221713035
    %v1156 = vmul.u32 %v1060, 2221713035
    %v1157 = vmul.u32 %v1061, 2221713035
    %v1158 = vmul.u32 %v1062, 2221713035
    %v1159 = vmul.u32 %v1063, 2221713035
    %v1160 = vmul.u32 %v1064, 2221713035
    %v1161 = vshrl.u32 %v1065, 16
    %v1162 = vshrl.u32 %v1066, 16
    %v1163 = vshrl.u32 %v1067, 16
    %v1164 = vshrl.u32 %v1068, 16
    %v1165 = vshrl.u32 %v1069, 16
    %v1166 = vshrl.u32 %v1070, 16
    %v1167 = vshrl.u32 %v1071, 16
    %v1168 = vshrl.u32 %v1072, 16
    %v1169 = vshrl.u32 %v1073, 16
    %v1170 = vshrl.u32 %v1074, 16
    %v1171 = vshrl.u32 %v1075, 16
    %v1172 = vshrl.u32 %v1076, 16
    %v1173 = vshrl.u32 %v1077, 16
    %v1174 = vshrl.u32 %v1078, 16
    %v1175 = vshrl.u32 %v1079, 16
    %v1176 = vshrl.u32 %v1080, 16
    %v1177 = vshrl.u32 %v1081, 16
    %v1178 = vshrl.u32 %v1082, 16
    %v1179 = vshrl.u32 %v1083, 16
    %v1180 = vshrl.u32 %v1084, 16
    %v1181 = vshrl.u32 %v1085, 16
    %v1182 = vshrl.u32 %v1086, 16
    %v1183 = vshrl.u32 %v1087, 16
    %v1184 = vshrl.u32 %v1088, 16
    %v1185 = vshrl.u32 %v1089, 16
    %v1186 = vshrl.u32 %v1090, 16
    %v1187 = vshrl.u32 %v1091, 16
    %v1188 = vshrl.u32 %v1092, 16
    %v1189 = vshrl.u32 %v1093, 16
    %v1190 = vshrl.u32 %v1094, 16
    %v1191 = vshrl.u32 %v1095, 16
    %v1192 = vshrl.u32 %v1096, 16
    %v1193 = vshrl.u32 %v1097, 16
    %v1194 = vshrl.u32 %v1098, 16
    %v1195 = vshrl.u32 %v1099, 16
    %v1196 = vshrl.u32 %v1100, 16
    %v1197 = vshrl.u32 %v1101, 16
    %v1198 = vshrl.u32 %v1102, 16
    %v1199 = vshrl.u32 %v1103, 16
    %v1200 = vshrl.u32 %v1104, 16
    %v1201 = vshrl.u32 %v1105, 16
    %v1202 = vshrl.u32 %v1106, 16
    %v1203 = vshrl.u32 %v1107, 16
    %v1204 = vshrl.u32 %v1108, 16
    %v1205 = vshrl.u32 %v1109, 16
    %v1206 = vshrl.u32 %v1110, 16
    %v1207 = vshrl.u32 %v1111, 16
    %v1208 = vshrl.u32 %v1112, 16
    %v1209 = vshrl.u32 %v1113, 16
    %v1210 = vshrl.u32 %v1114, 16
    %v1211 = vshrl.u32 %v1115, 16
    %v1212 = vshrl.u32 %v1116, 16
    %v1213 = vshrl.u32 %v1117, 16
    %v1214 = vshrl.u32 %v1118, 16
    %v1215 = vshrl.u32 %v1119, 16
    %v1216 = vshrl.u32 %v1120, 16
    %v1217 = vshrl.u32 %v1121, 16
    %v1218 = vshrl.u32 %v1122, 16
    %v1219 = vshrl.u32 %v1123, 16
    %v1220 = vshrl.u32 %v1124, 16
    %v1221 = vshrl.u32 %v1125, 16
    %v1222 = vshrl.u32 %v1126, 16
    %v1223 = vshrl.u32 %v1127, 16
    %v1224 = vshrl.u32 %v1128, 16
    %v1225 = vshrl.u32 %v1129, 16
    %v1226 = vshrl.u32 %v1130, 16
    %v1227 = vshrl.u32 %v1131, 16
    %v1228 = vshrl.u32 %v1132, 16
    %v1229 = vshrl.u32 %v1133, 16
    %v1230 = vshrl.u32 %v1134, 16
    %v1231 = vshrl.u32 %v1135, 16
    %v1232 = vshrl.u32 %v1136, 16
    %v1233 = vshrl.u32 %v1137, 16
    %v1234 = vshrl.u32 %v1138, 16
    %v1235 = vshrl.u32 %v1139, 16
    %v1236 = vshrl.u32 %v1140, 16
    %v1237 = vshrl.u32 %v1141, 16
    %v1238 = vshrl.u32 %v1142, 16
    %v1239 = vshrl.u32 %v1143, 16
    %v1240 = vshrl.u32 %v1144, 16
    %v1241 = vshrl.u32 %v1145, 16
    %v1242 = vshrl.u32 %v1146, 16
    %v1243 = vshrl.u32 %v1147, 16
    %v1244 = vshrl.u32 %v1148, 16
    %v1245 = vshrl.u32 %v1149, 16
    %v1246 = vshrl.u32 %v1150, 16
    %v1247 = vshrl.u32 %v1151, 16
    %v1248 = vshrl.u32 %v1152, 16
    %v1249 = vshrl.u32 %v1153, 16
    %v1250 = vshrl.u32 %v1154, 16
    %v1251 = vshrl.u32 %v1155, 16
    %v1252 = vshrl.u32 %v1156, 16
    %v1253 = vshrl.u32 %v1157, 16
    %v1254 = vshrl.u32 %v1158, 16
    %v1255 = vshrl.u32 %v1159, 16
    %v1256 = vshrl.u32 %v1160, 16
    %v1257 = vxor.u32 %v1065, %v1161
    %v1258 = vxor.u32 %v1066, %v1162
    %v1259 = vxor.u32 %v1067, %v1163
    %v1260 = vxor.u32 %v1068, %v1164
    %v1261 = vxor.u32 %v1069, %v1165
    %v1262 = vxor.u32 %v1070, %v1166
    %v1263 = vxor.u32 %v1071, %v1167
    %v1264 = vxor.u32 %v1072, %v1168
    %v1265 = vxor.u32 %v1073, %v1169
    %v1266 = vxor.u32 %v1074, %v1170
    %v1267 = vxor.u32 %v1075, %v1171
    %v1268 = vxor.u32 %v1076, %v1172
    %v1269 = vxor.u32 %v1077, %v1173
    %v1270 = vxor.u32 %v1078, %v1174
    %v1271 = vxor.u32 %v1079, %v1175
    %v1272 = vxor.u32 %v1080, %v1176
    %v1273 = vxor.u32 %v1081, %v1177
    %v1274 = vxor.u32 %v1082, %v1178
    %v1275 = vxor.u32 %v1083, %v1179
    %v1276 = vxor.u32 %v1084, %v1180
    %v1277 = vxor.u32 %v1085, %v1181
    %v1278 = vxor.u32 %v1086, %v1182
    %v1279 = vxor.u32 %v1087, %v1183
    %v1280 = vxor.u32 %v1088, %v1184
    %v1281 = vxor.u32 %v1089, %v1185
    %v1282 = vxor.u32 %v1090, %v1186
    %v1283 = vxor.u32 %v1091, %v1187
    %v1284 = vxor.u32 %v1092, %v1188
    %v1285 = vxor.u32 %v1093, %v1189
    %v1286 = vxor.u32 %v1094, %v1190
    %v1287 = vxor.u32 %v1095, %v1191
    %v1288 = vxor.u32 %v1096, %v1192
    %v1289 = vxor.u32 %v1097, %v1193
    %v1290 = vxor.u32 %v1098, %v1194
    %v1291 = vxor.u32 %v1099, %v1195
    %v1292 = vxor.u32 %v1100, %v1196
    %v1293 = vxor.u32 %v1101, %v1197
    %v1294 = vxor.u32 %v1102, %v1198
    %v1295 = vxor.u32 %v1103, %v1199
    %v1296 = vxor.u32 %v1104, %v1200
    %v1297 = vxor.u32 %v1105, %v1201
    %v1298 = vxor.u32 %v1106, %v1202
    %v1299 = vxor.u32 %v1107, %v1203
    %v1300 = vxor.u32 %v1108, %v1204
    %v1301 = vxor.u32 %v1109, %v1205
    %v1302 = vxor.u32 %v1110, %v1206
    %v1303 = vxor.u32 %v1111, %v1207
    %v1304 = vxor.u32 %v1112, %v1208
    %v1305 = vxor.u32 %v1113, %v1209
    %v1306 = vxor.u32 %v1114, %v1210
    %v1307 = vxor.u32 %v1115, %v1211
    %v1308 = vxor.u32 %v1116, %v1212
    %v1309 = vxor.u32 %v1117, %v1213
    %v1310 = vxor.u32 %v1118, %v1214
    %v1311 = vxor.u32 %v1119, %v1215
    %v1312 = vxor.u32 %v1120, %v1216
    %v1313 = vxor.u32 %v1121, %v1217
    %v1314 = vxor.u32 %v1122, %v1218
    %v1315 = vxor.u32 %v1123, %v1219
    %v1316 = vxor.u32 %v1124, %v1220
    %v1317 = vxor.u32 %v1125, %v1221
    %v1318 = vxor.u32 %v1126, %v1222
    %v1319 = vxor.u32 %v1127, %v1223
    %v1320 = vxor.u32 %v1128, %v1224
    %v1321 = vxor.u32 %v1129, %v1225
    %v1322 = vxor.u32 %v1130, %v1226
    %v1323 = vxor.u32 %v1131, %v1227
    %v1324 = vxor.u32 %v1132, %v1228
    %v1325 = vxor.u32 %v1133, %v1229
    %v1326 = vxor.u32 %v1134, %v1230
    %v1327 = vxor.u32 %v1135, %v1231
    %v1328 = vxor.u32 %v1136, %v1232
    %v1329 = vxor.u32 %v1137, %v1233
    %v1330 = vxor.u32 %v1138, %v1234
    %v1331 = vxor.u32 %v1139, %v1235
    %v1332 = vxor.u32 %v1140, %v1236
    %v1333 = vxor.u32 %v1141, %v1237
    %v1334 = vxor.u32 %v1142, %v1238
    %v1335 = vxor.u32 %v1143, %v1239
    %v1336 = vxor.u32 %v1144, %v1240
    %v1337 = vxor.u32 %v1145, %v1241
    %v1338 = vxor.u32 %v1146, %v1242
    %v1339 = vxor.u32 %v1147, %v1243
    %v1340 = vxor.u32 %v1148, %v1244
    %v1341 = vxor.u32 %v1149, %v1245
    %v1342 = vxor.u32 %v1150, %v1246
    %v1343 = vxor.u32 %v1151, %v1247
    %v1344 = vxor.u32 %v1152, %v1248
    %v1345 = vxor.u32 %v1153, %v1249
    %v1346 = vxor.u32 %v1154, %v1250
    %v1347 = vxor.u32 %v1155, %v1251
    %v1348 = vxor.u32 %v1156, %v1252
    %v1349 = vxor.u32 %v1157, %v1253
    %v1350 = vxor.u32 %v1158, %v1254
    %v1351 = vxor.u32 %v1159, %v1255
    %v1352 = vxor.u32 %v1160, %v1256
    %vm1353 = vcmp.ge.u32.totalorder %v1257, 429496729
    %vm1354 = vcmp.ge.u32.totalorder %v1258, 429496729
    %vm1355 = vcmp.ge.u32.totalorder %v1259, 429496729
    %vm1356 = vcmp.ge.u32.totalorder %v1260, 429496729
    %vm1357 = vcmp.ge.u32.totalorder %v1261, 429496729
    %vm1358 = vcmp.ge.u32.totalorder %v1262, 429496729
    %vm1359 = vcmp.ge.u32.totalorder %v1263, 429496729
    %vm1360 = vcmp.ge.u32.totalorder %v1264, 429496729
    %vm1361 = vcmp.ge.u32.totalorder %v1265, 429496729
    %vm1362 = vcmp.ge.u32.totalorder %v1266, 429496729
    %vm1363 = vcmp.ge.u32.totalorder %v1267, 429496729
    %vm1364 = vcmp.ge.u32.totalorder %v1268, 429496729
    %vm1365 = vcmp.ge.u32.totalorder %v1269, 429496729
    %vm1366 = vcmp.ge.u32.totalorder %v1270, 429496729
    %vm1367 = vcmp.ge.u32.totalorder %v1271, 429496729
    %vm1368 = vcmp.ge.u32.totalorder %v1272, 429496729
    %vm1369 = vcmp.ge.u32.totalorder %v1273, 429496729
    %vm1370 = vcmp.ge.u32.totalorder %v1274, 429496729
    %vm1371 = vcmp.ge.u32.totalorder %v1275, 429496729
    %vm1372 = vcmp.ge.u32.totalorder %v1276, 429496729
    %vm1373 = vcmp.ge.u32.totalorder %v1277, 429496729
    %vm1374 = vcmp.ge.u32.totalorder %v1278, 429496729
    %vm1375 = vcmp.ge.u32.totalorder %v1279, 429496729
    %vm1376 = vcmp.ge.u32.totalorder %v1280, 429496729
    %vm1377 = vcmp.ge.u32.totalorder %v1281, 429496729
    %vm1378 = vcmp.ge.u32.totalorder %v1282, 429496729
    %vm1379 = vcmp.ge.u32.totalorder %v1283, 429496729
    %vm1380 = vcmp.ge.u32.totalorder %v1284, 429496729
    %vm1381 = vcmp.ge.u32.totalorder %v1285, 429496729
    %vm1382 = vcmp.ge.u32.totalorder %v1286, 429496729
    %vm1383 = vcmp.ge.u32.totalorder %v1287, 429496729
    %vm1384 = vcmp.ge.u32.totalorder %v1288, 429496729
    %vm1385 = vcmp.ge.u32.totalorder %v1289, 429496729
    %vm1386 = vcmp.ge.u32.totalorder %v1290, 429496729
    %vm1387 = vcmp.ge.u32.totalorder %v1291, 429496729
    %vm1388 = vcmp.ge.u32.totalorder %v1292, 429496729
    %vm1389 = vcmp.ge.u32.totalorder %v1293, 429496729
    %vm1390 = vcmp.ge.u32.totalorder %v1294, 429496729
    %vm1391 = vcmp.ge.u32.totalorder %v1295, 429496729
    %vm1392 = vcmp.ge.u32.totalorder %v1296, 429496729
    %vm1393 = vcmp.ge.u32.totalorder %v1297, 429496729
    %vm1394 = vcmp.ge.u32.totalorder %v1298, 429496729
    %vm1395 = vcmp.ge.u32.totalorder %v1299, 429496729
    %vm1396 = vcmp.ge.u32.totalorder %v1300, 429496729
    %vm1397 = vcmp.ge.u32.totalorder %v1301, 429496729
    %vm1398 = vcmp.ge.u32.totalorder %v1302, 429496729
    %vm1399 = vcmp.ge.u32.totalorder %v1303, 429496729
    %vm1400 = vcmp.ge.u32.totalorder %v1304, 429496729
    %vm1401 = vcmp.ge.u32.totalorder %v1305, 429496729
    %vm1402 = vcmp.ge.u32.totalorder %v1306, 429496729
    %vm1403 = vcmp.ge.u32.totalorder %v1307, 429496729
    %vm1404 = vcmp.ge.u32.totalorder %v1308, 429496729
    %vm1405 = vcmp.ge.u32.totalorder %v1309, 429496729
    %vm1406 = vcmp.ge.u32.totalorder %v1310, 429496729
    %vm1407 = vcmp.ge.u32.totalorder %v1311, 429496729
    %vm1408 = vcmp.ge.u32.totalorder %v1312, 429496729
    %vm1409 = vcmp.ge.u32.totalorder %v1313, 429496729
    %vm1410 = vcmp.ge.u32.totalorder %v1314, 429496729
    %vm1411 = vcmp.ge.u32.totalorder %v1315, 429496729
    %vm1412 = vcmp.ge.u32.totalorder %v1316, 429496729
    %vm1413 = vcmp.ge.u32.totalorder %v1317, 429496729
    %vm1414 = vcmp.ge.u32.totalorder %v1318, 429496729
    %vm1415 = vcmp.ge.u32.totalorder %v1319, 429496729
    %vm1416 = vcmp.ge.u32.totalorder %v1320, 429496729
    %vm1417 = vcmp.ge.u32.totalorder %v1321, 429496729
    %vm1418 = vcmp.ge.u32.totalorder %v1322, 429496729
    %vm1419 = vcmp.ge.u32.totalorder %v1323, 429496729
    %vm1420 = vcmp.ge.u32.totalorder %v1324, 429496729
    %vm1421 = vcmp.ge.u32.totalorder %v1325, 429496729
    %vm1422 = vcmp.ge.u32.totalorder %v1326, 429496729
    %vm1423 = vcmp.ge.u32.totalorder %v1327, 429496729
    %vm1424 = vcmp.ge.u32.totalorder %v1328, 429496729
    %vm1425 = vcmp.ge.u32.totalorder %v1329, 429496729
    %vm1426 = vcmp.ge.u32.totalorder %v1330, 429496729
    %vm1427 = vcmp.ge.u32.totalorder %v1331, 429496729
    %vm1428 = vcmp.ge.u32.totalorder %v1332, 429496729
    %vm1429 = vcmp.ge.u32.totalorder %v1333, 429496729
    %vm1430 = vcmp.ge.u32.totalorder %v1334, 429496729
    %vm1431 = vcmp.ge.u32.totalorder %v1335, 429496729
    %vm1432 = vcmp.ge.u32.totalorder %v1336, 429496729
    %vm1433 = vcmp.ge.u32.totalorder %v1337, 429496729
    %vm1434 = vcmp.ge.u32.totalorder %v1338, 429496729
    %vm1435 = vcmp.ge.u32.totalorder %v1339, 429496729
    %vm1436 = vcmp.ge.u32.totalorder %v1340, 429496729
    %vm1437 = vcmp.ge.u32.totalorder %v1341, 429496729
    %vm1438 = vcmp.ge.u32.totalorder %v1342, 429496729
    %vm1439 = vcmp.ge.u32.totalorder %v1343, 429496729
    %vm1440 = vcmp.ge.u32.totalorder %v1344, 429496729
    %vm1441 = vcmp.ge.u32.totalorder %v1345, 429496729
    %vm1442 = vcmp.ge.u32.totalorder %v1346, 429496729
    %vm1443 = vcmp.ge.u32.totalorder %v1347, 429496729
    %vm1444 = vcmp.ge.u32.totalorder %v1348, 429496729
    %vm1445 = vcmp.ge.u32.totalorder %v1349, 429496729
    %vm1446 = vcmp.ge.u32.totalorder %v1350, 429496729
    %vm1447 = vcmp.ge.u32.totalorder %v1351, 429496729
    %vm1448 = vcmp.ge.u32.totalorder %v1352, 429496729
    %v1449 = vmul.f32 %v48, 1.1111112
    %v1450 = vmul.f32 %v49, 1.1111112
    %v1451 = vmul.f32 %v50, 1.1111112
    %v1452 = vmul.f32 %v51, 1.1111112
    %v1453 = vmul.f32 %v52, 1.1111112
    %v1454 = vmul.f32 %v53, 1.1111112
    %v1455 = vmul.f32 %v54, 1.1111112
    %v1456 = vmul.f32 %v55, 1.1111112
    %v1457 = vmul.f32 %v56, 1.1111112
    %v1458 = vmul.f32 %v57, 1.1111112
    %v1459 = vmul.f32 %v58, 1.1111112
    %v1460 = vmul.f32 %v59, 1.1111112
    %v1461 = vmul.f32 %v60, 1.1111112
    %v1462 = vmul.f32 %v61, 1.1111112
    %v1463 = vmul.f32 %v62, 1.1111112
    %v1464 = vmul.f32 %v63, 1.1111112
    %v1465 = vmul.f32 %v64, 1.1111112
    %v1466 = vmul.f32 %v65, 1.1111112
    %v1467 = vmul.f32 %v66, 1.1111112
    %v1468 = vmul.f32 %v67, 1.1111112
    %v1469 = vmul.f32 %v68, 1.1111112
    %v1470 = vmul.f32 %v69, 1.1111112
    %v1471 = vmul.f32 %v70, 1.1111112
    %v1472 = vmul.f32 %v71, 1.1111112
    %v1473 = vmul.f32 %v72, 1.1111112
    %v1474 = vmul.f32 %v73, 1.1111112
    %v1475 = vmul.f32 %v74, 1.1111112
    %v1476 = vmul.f32 %v75, 1.1111112
    %v1477 = vmul.f32 %v76, 1.1111112
    %v1478 = vmul.f32 %v77, 1.1111112
    %v1479 = vmul.f32 %v78, 1.1111112
    %v1480 = vmul.f32 %v79, 1.1111112
    %v1481 = vmul.f32 %v80, 1.1111112
    %v1482 = vmul.f32 %v81, 1.1111112
    %v1483 = vmul.f32 %v82, 1.1111112
    %v1484 = vmul.f32 %v83, 1.1111112
    %v1485 = vmul.f32 %v84, 1.1111112
    %v1486 = vmul.f32 %v85, 1.1111112
    %v1487 = vmul.f32 %v86, 1.1111112
    %v1488 = vmul.f32 %v87, 1.1111112
    %v1489 = vmul.f32 %v88, 1.1111112
    %v1490 = vmul.f32 %v89, 1.1111112
    %v1491 = vmul.f32 %v90, 1.1111112
    %v1492 = vmul.f32 %v91, 1.1111112
    %v1493 = vmul.f32 %v92, 1.1111112
    %v1494 = vmul.f32 %v93, 1.1111112
    %v1495 = vmul.f32 %v94, 1.1111112
    %v1496 = vmul.f32 %v95, 1.1111112
    %v1497 = vmul.f32 %v96, 1.1111112
    %v1498 = vmul.f32 %v97, 1.1111112
    %v1499 = vmul.f32 %v98, 1.1111112
    %v1500 = vmul.f32 %v99, 1.1111112
    %v1501 = vmul.f32 %v100, 1.1111112
    %v1502 = vmul.f32 %v101, 1.1111112
    %v1503 = vmul.f32 %v102, 1.1111112
    %v1504 = vmul.f32 %v103, 1.1111112
    %v1505 = vmul.f32 %v104, 1.1111112
    %v1506 = vmul.f32 %v105, 1.1111112
    %v1507 = vmul.f32 %v106, 1.1111112
    %v1508 = vmul.f32 %v107, 1.1111112
    %v1509 = vmul.f32 %v108, 1.1111112
    %v1510 = vmul.f32 %v109, 1.1111112
    %v1511 = vmul.f32 %v110, 1.1111112
    %v1512 = vmul.f32 %v111, 1.1111112
    %v1513 = vmul.f32 %v112, 1.1111112
    %v1514 = vmul.f32 %v113, 1.1111112
    %v1515 = vmul.f32 %v114, 1.1111112
    %v1516 = vmul.f32 %v115, 1.1111112
    %v1517 = vmul.f32 %v116, 1.1111112
    %v1518 = vmul.f32 %v117, 1.1111112
    %v1519 = vmul.f32 %v118, 1.1111112
    %v1520 = vmul.f32 %v119, 1.1111112
    %v1521 = vmul.f32 %v120, 1.1111112
    %v1522 = vmul.f32 %v121, 1.1111112
    %v1523 = vmul.f32 %v122, 1.1111112
    %v1524 = vmul.f32 %v123, 1.1111112
    %v1525 = vmul.f32 %v124, 1.1111112
    %v1526 = vmul.f32 %v125, 1.1111112
    %v1527 = vmul.f32 %v126, 1.1111112
    %v1528 = vmul.f32 %v127, 1.1111112
    %v1529 = vmul.f32 %v128, 1.1111112
    %v1530 = vmul.f32 %v129, 1.1111112
    %v1531 = vmul.f32 %v130, 1.1111112
    %v1532 = vmul.f32 %v131, 1.1111112
    %v1533 = vmul.f32 %v132, 1.1111112
    %v1534 = vmul.f32 %v133, 1.1111112
    %v1535 = vmul.f32 %v134, 1.1111112
    %v1536 = vmul.f32 %v135, 1.1111112
    %v1537 = vmul.f32 %v136, 1.1111112
    %v1538 = vmul.f32 %v137, 1.1111112
    %v1539 = vmul.f32 %v138, 1.1111112
    %v1540 = vmul.f32 %v139, 1.1111112
    %v1541 = vmul.f32 %v140, 1.1111112
    %v1542 = vmul.f32 %v141, 1.1111112
    %v1543 = vmul.f32 %v142, 1.1111112
    %v1544 = vmul.f32 %v143, 1.1111112
    %v1545 = vsel %vm1353, %v1449, 0.0
    %v1546 = vsel %vm1354, %v1450, 0.0
    %v1547 = vsel %vm1355, %v1451, 0.0
    %v1548 = vsel %vm1356, %v1452, 0.0
    %v1549 = vsel %vm1357, %v1453, 0.0
    %v1550 = vsel %vm1358, %v1454, 0.0
    %v1551 = vsel %vm1359, %v1455, 0.0
    %v1552 = vsel %vm1360, %v1456, 0.0
    %v1553 = vsel %vm1361, %v1457, 0.0
    %v1554 = vsel %vm1362, %v1458, 0.0
    %v1555 = vsel %vm1363, %v1459, 0.0
    %v1556 = vsel %vm1364, %v1460, 0.0
    %v1557 = vsel %vm1365, %v1461, 0.0
    %v1558 = vsel %vm1366, %v1462, 0.0
    %v1559 = vsel %vm1367, %v1463, 0.0
    %v1560 = vsel %vm1368, %v1464, 0.0
    %v1561 = vsel %vm1369, %v1465, 0.0
    %v1562 = vsel %vm1370, %v1466, 0.0
    %v1563 = vsel %vm1371, %v1467, 0.0
    %v1564 = vsel %vm1372, %v1468, 0.0
    %v1565 = vsel %vm1373, %v1469, 0.0
    %v1566 = vsel %vm1374, %v1470, 0.0
    %v1567 = vsel %vm1375, %v1471, 0.0
    %v1568 = vsel %vm1376, %v1472, 0.0
    %v1569 = vsel %vm1377, %v1473, 0.0
    %v1570 = vsel %vm1378, %v1474, 0.0
    %v1571 = vsel %vm1379, %v1475, 0.0
    %v1572 = vsel %vm1380, %v1476, 0.0
    %v1573 = vsel %vm1381, %v1477, 0.0
    %v1574 = vsel %vm1382, %v1478, 0.0
    %v1575 = vsel %vm1383, %v1479, 0.0
    %v1576 = vsel %vm1384, %v1480, 0.0
    %v1577 = vsel %vm1385, %v1481, 0.0
    %v1578 = vsel %vm1386, %v1482, 0.0
    %v1579 = vsel %vm1387, %v1483, 0.0
    %v1580 = vsel %vm1388, %v1484, 0.0
    %v1581 = vsel %vm1389, %v1485, 0.0
    %v1582 = vsel %vm1390, %v1486, 0.0
    %v1583 = vsel %vm1391, %v1487, 0.0
    %v1584 = vsel %vm1392, %v1488, 0.0
    %v1585 = vsel %vm1393, %v1489, 0.0
    %v1586 = vsel %vm1394, %v1490, 0.0
    %v1587 = vsel %vm1395, %v1491, 0.0
    %v1588 = vsel %vm1396, %v1492, 0.0
    %v1589 = vsel %vm1397, %v1493, 0.0
    %v1590 = vsel %vm1398, %v1494, 0.0
    %v1591 = vsel %vm1399, %v1495, 0.0
    %v1592 = vsel %vm1400, %v1496, 0.0
    %v1593 = vsel %vm1401, %v1497, 0.0
    %v1594 = vsel %vm1402, %v1498, 0.0
    %v1595 = vsel %vm1403, %v1499, 0.0
    %v1596 = vsel %vm1404, %v1500, 0.0
    %v1597 = vsel %vm1405, %v1501, 0.0
    %v1598 = vsel %vm1406, %v1502, 0.0
    %v1599 = vsel %vm1407, %v1503, 0.0
    %v1600 = vsel %vm1408, %v1504, 0.0
    %v1601 = vsel %vm1409, %v1505, 0.0
    %v1602 = vsel %vm1410, %v1506, 0.0
    %v1603 = vsel %vm1411, %v1507, 0.0
    %v1604 = vsel %vm1412, %v1508, 0.0
    %v1605 = vsel %vm1413, %v1509, 0.0
    %v1606 = vsel %vm1414, %v1510, 0.0
    %v1607 = vsel %vm1415, %v1511, 0.0
    %v1608 = vsel %vm1416, %v1512, 0.0
    %v1609 = vsel %vm1417, %v1513, 0.0
    %v1610 = vsel %vm1418, %v1514, 0.0
    %v1611 = vsel %vm1419, %v1515, 0.0
    %v1612 = vsel %vm1420, %v1516, 0.0
    %v1613 = vsel %vm1421, %v1517, 0.0
    %v1614 = vsel %vm1422, %v1518, 0.0
    %v1615 = vsel %vm1423, %v1519, 0.0
    %v1616 = vsel %vm1424, %v1520, 0.0
    %v1617 = vsel %vm1425, %v1521, 0.0
    %v1618 = vsel %vm1426, %v1522, 0.0
    %v1619 = vsel %vm1427, %v1523, 0.0
    %v1620 = vsel %vm1428, %v1524, 0.0
    %v1621 = vsel %vm1429, %v1525, 0.0
    %v1622 = vsel %vm1430, %v1526, 0.0
    %v1623 = vsel %vm1431, %v1527, 0.0
    %v1624 = vsel %vm1432, %v1528, 0.0
    %v1625 = vsel %vm1433, %v1529, 0.0
    %v1626 = vsel %vm1434, %v1530, 0.0
    %v1627 = vsel %vm1435, %v1531, 0.0
    %v1628 = vsel %vm1436, %v1532, 0.0
    %v1629 = vsel %vm1437, %v1533, 0.0
    %v1630 = vsel %vm1438, %v1534, 0.0
    %v1631 = vsel %vm1439, %v1535, 0.0
    %v1632 = vsel %vm1440, %v1536, 0.0
    %v1633 = vsel %vm1441, %v1537, 0.0
    %v1634 = vsel %vm1442, %v1538, 0.0
    %v1635 = vsel %vm1443, %v1539, 0.0
    %v1636 = vsel %vm1444, %v1540, 0.0
    %v1637 = vsel %vm1445, %v1541, 0.0
    %v1638 = vsel %vm1446, %v1542, 0.0
    %v1639 = vsel %vm1447, %v1543, 0.0
    %v1640 = vsel %vm1448, %v1544, 0.0
    %v1641 = vadd.f32 %v144, %v1545
    %v1642 = vadd.f32 %v145, %v1546
    %v1643 = vadd.f32 %v146, %v1547
    %v1644 = vadd.f32 %v147, %v1548
    %v1645 = vadd.f32 %v148, %v1549
    %v1646 = vadd.f32 %v149, %v1550
    %v1647 = vadd.f32 %v150, %v1551
    %v1648 = vadd.f32 %v151, %v1552
    %v1649 = vadd.f32 %v152, %v1553
    %v1650 = vadd.f32 %v153, %v1554
    %v1651 = vadd.f32 %v154, %v1555
    %v1652 = vadd.f32 %v155, %v1556
    %v1653 = vadd.f32 %v156, %v1557
    %v1654 = vadd.f32 %v157, %v1558
    %v1655 = vadd.f32 %v158, %v1559
    %v1656 = vadd.f32 %v159, %v1560
    %v1657 = vadd.f32 %v160, %v1561
    %v1658 = vadd.f32 %v161, %v1562
    %v1659 = vadd.f32 %v162, %v1563
    %v1660 = vadd.f32 %v163, %v1564
    %v1661 = vadd.f32 %v164, %v1565
    %v1662 = vadd.f32 %v165, %v1566
    %v1663 = vadd.f32 %v166, %v1567
    %v1664 = vadd.f32 %v167, %v1568
    %v1665 = vadd.f32 %v168, %v1569
    %v1666 = vadd.f32 %v169, %v1570
    %v1667 = vadd.f32 %v170, %v1571
    %v1668 = vadd.f32 %v171, %v1572
    %v1669 = vadd.f32 %v172, %v1573
    %v1670 = vadd.f32 %v173, %v1574
    %v1671 = vadd.f32 %v174, %v1575
    %v1672 = vadd.f32 %v175, %v1576
    %v1673 = vadd.f32 %v176, %v1577
    %v1674 = vadd.f32 %v177, %v1578
    %v1675 = vadd.f32 %v178, %v1579
    %v1676 = vadd.f32 %v179, %v1580
    %v1677 = vadd.f32 %v180, %v1581
    %v1678 = vadd.f32 %v181, %v1582
    %v1679 = vadd.f32 %v182, %v1583
    %v1680 = vadd.f32 %v183, %v1584
    %v1681 = vadd.f32 %v184, %v1585
    %v1682 = vadd.f32 %v185, %v1586
    %v1683 = vadd.f32 %v186, %v1587
    %v1684 = vadd.f32 %v187, %v1588
    %v1685 = vadd.f32 %v188, %v1589
    %v1686 = vadd.f32 %v189, %v1590
    %v1687 = vadd.f32 %v190, %v1591
    %v1688 = vadd.f32 %v191, %v1592
    %v1689 = vadd.f32 %v192, %v1593
    %v1690 = vadd.f32 %v193, %v1594
    %v1691 = vadd.f32 %v194, %v1595
    %v1692 = vadd.f32 %v195, %v1596
    %v1693 = vadd.f32 %v196, %v1597
    %v1694 = vadd.f32 %v197, %v1598
    %v1695 = vadd.f32 %v198, %v1599
    %v1696 = vadd.f32 %v199, %v1600
    %v1697 = vadd.f32 %v200, %v1601
    %v1698 = vadd.f32 %v201, %v1602
    %v1699 = vadd.f32 %v202, %v1603
    %v1700 = vadd.f32 %v203, %v1604
    %v1701 = vadd.f32 %v204, %v1605
    %v1702 = vadd.f32 %v205, %v1606
    %v1703 = vadd.f32 %v206, %v1607
    %v1704 = vadd.f32 %v207, %v1608
    %v1705 = vadd.f32 %v208, %v1609
    %v1706 = vadd.f32 %v209, %v1610
    %v1707 = vadd.f32 %v210, %v1611
    %v1708 = vadd.f32 %v211, %v1612
    %v1709 = vadd.f32 %v212, %v1613
    %v1710 = vadd.f32 %v213, %v1614
    %v1711 = vadd.f32 %v214, %v1615
    %v1712 = vadd.f32 %v215, %v1616
    %v1713 = vadd.f32 %v216, %v1617
    %v1714 = vadd.f32 %v217, %v1618
    %v1715 = vadd.f32 %v218, %v1619
    %v1716 = vadd.f32 %v219, %v1620
    %v1717 = vadd.f32 %v220, %v1621
    %v1718 = vadd.f32 %v221, %v1622
    %v1719 = vadd.f32 %v222, %v1623
    %v1720 = vadd.f32 %v223, %v1624
    %v1721 = vadd.f32 %v224, %v1625
    %v1722 = vadd.f32 %v225, %v1626
    %v1723 = vadd.f32 %v226, %v1627
    %v1724 = vadd.f32 %v227, %v1628
    %v1725 = vadd.f32 %v228, %v1629
    %v1726 = vadd.f32 %v229, %v1630
    %v1727 = vadd.f32 %v230, %v1631
    %v1728 = vadd.f32 %v231, %v1632
    %v1729 = vadd.f32 %v232, %v1633
    %v1730 = vadd.f32 %v233, %v1634
    %v1731 = vadd.f32 %v234, %v1635
    %v1732 = vadd.f32 %v235, %v1636
    %v1733 = vadd.f32 %v236, %v1637
    %v1734 = vadd.f32 %v237, %v1638
    %v1735 = vadd.f32 %v238, %v1639
    %v1736 = vadd.f32 %v239, %v1640
    %v1737 = vadd.f32 %v1641, %v1642
    %1738 = vadd.xlane.f32.xlu0 %v1737
    %v1739 = vpop.xlane.xlu0 %1738
    %v1740 = vadd.f32 %v1643, %v1644
    %1741 = vadd.xlane.f32.xlu0 %v1740
    %v1742 = vpop.xlane.xlu0 %1741
    %v1743 = vadd.f32 %v1645, %v1646
    %1744 = vadd.xlane.f32.xlu0 %v1743
    %v1745 = vpop.xlane.xlu0 %1744
    %v1746 = vadd.f32 %v1647, %v1648
    %1747 = vadd.xlane.f32.xlu0 %v1746
    %v1748 = vpop.xlane.xlu0 %1747
    %v1749 = vadd.f32 %v1649, %v1650
    %1750 = vadd.xlane.f32.xlu0 %v1749
    %v1751 = vpop.xlane.xlu0 %1750
    %v1752 = vadd.f32 %v1651, %v1652
    %1753 = vadd.xlane.f32.xlu0 %v1752
    %v1754 = vpop.xlane.xlu0 %1753
    %v1755 = vadd.f32 %v1653, %v1654
    %1756 = vadd.xlane.f32.xlu0 %v1755
    %v1757 = vpop.xlane.xlu0 %1756
    %v1758 = vadd.f32 %v1655, %v1656
    %1759 = vadd.xlane.f32.xlu0 %v1758
    %v1760 = vpop.xlane.xlu0 %1759
    %v1761 = vadd.f32 %v1657, %v1658
    %1762 = vadd.xlane.f32.xlu0 %v1761
    %v1763 = vpop.xlane.xlu0 %1762
    %v1764 = vadd.f32 %v1659, %v1660
    %1765 = vadd.xlane.f32.xlu0 %v1764
    %v1766 = vpop.xlane.xlu0 %1765
    %v1767 = vadd.f32 %v1661, %v1662
    %1768 = vadd.xlane.f32.xlu0 %v1767
    %v1769 = vpop.xlane.xlu0 %1768
    %v1770 = vadd.f32 %v1663, %v1664
    %1771 = vadd.xlane.f32.xlu0 %v1770
    %v1772 = vpop.xlane.xlu0 %1771
    %v1773 = vadd.f32 %v1665, %v1666
    %1774 = vadd.xlane.f32.xlu0 %v1773
    %v1775 = vpop.xlane.xlu0 %1774
    %v1776 = vadd.f32 %v1667, %v1668
    %1777 = vadd.xlane.f32.xlu0 %v1776
    %v1778 = vpop.xlane.xlu0 %1777
    %v1779 = vadd.f32 %v1669, %v1670
    %1780 = vadd.xlane.f32.xlu0 %v1779
    %v1781 = vpop.xlane.xlu0 %1780
    %v1782 = vadd.f32 %v1671, %v1672
    %1783 = vadd.xlane.f32.xlu0 %v1782
    %v1784 = vpop.xlane.xlu0 %1783
    %v1785 = vadd.f32 %v1673, %v1674
    %1786 = vadd.xlane.f32.xlu0 %v1785
    %v1787 = vpop.xlane.xlu0 %1786
    %v1788 = vadd.f32 %v1675, %v1676
    %1789 = vadd.xlane.f32.xlu0 %v1788
    %v1790 = vpop.xlane.xlu0 %1789
    %v1791 = vadd.f32 %v1677, %v1678
    %1792 = vadd.xlane.f32.xlu0 %v1791
    %v1793 = vpop.xlane.xlu0 %1792
    %v1794 = vadd.f32 %v1679, %v1680
    %1795 = vadd.xlane.f32.xlu0 %v1794
    %v1796 = vpop.xlane.xlu0 %1795
    %v1797 = vadd.f32 %v1681, %v1682
    %1798 = vadd.xlane.f32.xlu0 %v1797
    %v1799 = vpop.xlane.xlu0 %1798
    %v1800 = vadd.f32 %v1683, %v1684
    %1801 = vadd.xlane.f32.xlu0 %v1800
    %v1802 = vpop.xlane.xlu0 %1801
    %v1803 = vadd.f32 %v1685, %v1686
    %1804 = vadd.xlane.f32.xlu0 %v1803
    %v1805 = vpop.xlane.xlu0 %1804
    %v1806 = vadd.f32 %v1687, %v1688
    %1807 = vadd.xlane.f32.xlu0 %v1806
    %v1808 = vpop.xlane.xlu0 %1807
    %v1809 = vadd.f32 %v1689, %v1690
    %1810 = vadd.xlane.f32.xlu0 %v1809
    %v1811 = vpop.xlane.xlu0 %1810
    %v1812 = vadd.f32 %v1691, %v1692
    %1813 = vadd.xlane.f32.xlu0 %v1812
    %v1814 = vpop.xlane.xlu0 %1813
    %v1815 = vadd.f32 %v1693, %v1694
    %1816 = vadd.xlane.f32.xlu0 %v1815
    %v1817 = vpop.xlane.xlu0 %1816
    %v1818 = vadd.f32 %v1695, %v1696
    %1819 = vadd.xlane.f32.xlu0 %v1818
    %v1820 = vpop.xlane.xlu0 %1819
    %v1821 = vadd.f32 %v1697, %v1698
    %1822 = vadd.xlane.f32.xlu0 %v1821
    %v1823 = vpop.xlane.xlu0 %1822
    %v1824 = vadd.f32 %v1699, %v1700
    %1825 = vadd.xlane.f32.xlu0 %v1824
    %v1826 = vpop.xlane.xlu0 %1825
    %v1827 = vadd.f32 %v1701, %v1702
    %1828 = vadd.xlane.f32.xlu0 %v1827
    %v1829 = vpop.xlane.xlu0 %1828
    %v1830 = vadd.f32 %v1703, %v1704
    %1831 = vadd.xlane.f32.xlu0 %v1830
    %v1832 = vpop.xlane.xlu0 %1831
    %v1833 = vadd.f32 %v1705, %v1706
    %1834 = vadd.xlane.f32.xlu0 %v1833
    %v1835 = vpop.xlane.xlu0 %1834
    %v1836 = vadd.f32 %v1707, %v1708
    %1837 = vadd.xlane.f32.xlu0 %v1836
    %v1838 = vpop.xlane.xlu0 %1837
    %v1839 = vadd.f32 %v1709, %v1710
    %1840 = vadd.xlane.f32.xlu0 %v1839
    %v1841 = vpop.xlane.xlu0 %1840
    %v1842 = vadd.f32 %v1711, %v1712
    %1843 = vadd.xlane.f32.xlu0 %v1842
    %v1844 = vpop.xlane.xlu0 %1843
    %v1845 = vadd.f32 %v1713, %v1714
    %1846 = vadd.xlane.f32.xlu0 %v1845
    %v1847 = vpop.xlane.xlu0 %1846
    %v1848 = vadd.f32 %v1715, %v1716
    %1849 = vadd.xlane.f32.xlu0 %v1848
    %v1850 = vpop.xlane.xlu0 %1849
    %v1851 = vadd.f32 %v1717, %v1718
    %1852 = vadd.xlane.f32.xlu0 %v1851
    %v1853 = vpop.xlane.xlu0 %1852
    %v1854 = vadd.f32 %v1719, %v1720
    %1855 = vadd.xlane.f32.xlu0 %v1854
    %v1856 = vpop.xlane.xlu0 %1855
    %v1857 = vadd.f32 %v1721, %v1722
    %1858 = vadd.xlane.f32.xlu0 %v1857
    %v1859 = vpop.xlane.xlu0 %1858
    %v1860 = vadd.f32 %v1723, %v1724
    %1861 = vadd.xlane.f32.xlu0 %v1860
    %v1862 = vpop.xlane.xlu0 %1861
    %v1863 = vadd.f32 %v1725, %v1726
    %1864 = vadd.xlane.f32.xlu0 %v1863
    %v1865 = vpop.xlane.xlu0 %1864
    %v1866 = vadd.f32 %v1727, %v1728
    %1867 = vadd.xlane.f32.xlu0 %v1866
    %v1868 = vpop.xlane.xlu0 %1867
    %v1869 = vadd.f32 %v1729, %v1730
    %1870 = vadd.xlane.f32.xlu0 %v1869
    %v1871 = vpop.xlane.xlu0 %1870
    %v1872 = vadd.f32 %v1731, %v1732
    %1873 = vadd.xlane.f32.xlu0 %v1872
    %v1874 = vpop.xlane.xlu0 %1873
    %v1875 = vadd.f32 %v1733, %v1734
    %1876 = vadd.xlane.f32.xlu0 %v1875
    %v1877 = vpop.xlane.xlu0 %1876
    %v1878 = vadd.f32 %v1735, %v1736
    %1879 = vadd.xlane.f32.xlu0 %v1878
    %v1880 = vpop.xlane.xlu0 %1879
    %v1881 = vmul.f32 %v1739, 0.00390625
    %v1882 = vmul.f32 %v1742, 0.00390625
    %v1883 = vmul.f32 %v1745, 0.00390625
    %v1884 = vmul.f32 %v1748, 0.00390625
    %v1885 = vmul.f32 %v1751, 0.00390625
    %v1886 = vmul.f32 %v1754, 0.00390625
    %v1887 = vmul.f32 %v1757, 0.00390625
    %v1888 = vmul.f32 %v1760, 0.00390625
    %v1889 = vmul.f32 %v1763, 0.00390625
    %v1890 = vmul.f32 %v1766, 0.00390625
    %v1891 = vmul.f32 %v1769, 0.00390625
    %v1892 = vmul.f32 %v1772, 0.00390625
    %v1893 = vmul.f32 %v1775, 0.00390625
    %v1894 = vmul.f32 %v1778, 0.00390625
    %v1895 = vmul.f32 %v1781, 0.00390625
    %v1896 = vmul.f32 %v1784, 0.00390625
    %v1897 = vmul.f32 %v1787, 0.00390625
    %v1898 = vmul.f32 %v1790, 0.00390625
    %v1899 = vmul.f32 %v1793, 0.00390625
    %v1900 = vmul.f32 %v1796, 0.00390625
    %v1901 = vmul.f32 %v1799, 0.00390625
    %v1902 = vmul.f32 %v1802, 0.00390625
    %v1903 = vmul.f32 %v1805, 0.00390625
    %v1904 = vmul.f32 %v1808, 0.00390625
    %v1905 = vmul.f32 %v1811, 0.00390625
    %v1906 = vmul.f32 %v1814, 0.00390625
    %v1907 = vmul.f32 %v1817, 0.00390625
    %v1908 = vmul.f32 %v1820, 0.00390625
    %v1909 = vmul.f32 %v1823, 0.00390625
    %v1910 = vmul.f32 %v1826, 0.00390625
    %v1911 = vmul.f32 %v1829, 0.00390625
    %v1912 = vmul.f32 %v1832, 0.00390625
    %v1913 = vmul.f32 %v1835, 0.00390625
    %v1914 = vmul.f32 %v1838, 0.00390625
    %v1915 = vmul.f32 %v1841, 0.00390625
    %v1916 = vmul.f32 %v1844, 0.00390625
    %v1917 = vmul.f32 %v1847, 0.00390625
    %v1918 = vmul.f32 %v1850, 0.00390625
    %v1919 = vmul.f32 %v1853, 0.00390625
    %v1920 = vmul.f32 %v1856, 0.00390625
    %v1921 = vmul.f32 %v1859, 0.00390625
    %v1922 = vmul.f32 %v1862, 0.00390625
    %v1923 = vmul.f32 %v1865, 0.00390625
    %v1924 = vmul.f32 %v1868, 0.00390625
    %v1925 = vmul.f32 %v1871, 0.00390625
    %v1926 = vmul.f32 %v1874, 0.00390625
    %v1927 = vmul.f32 %v1877, 0.00390625
    %v1928 = vmul.f32 %v1880, 0.00390625
    %v1929 = vsub.f32 %v1641, %v1881
    %v1930 = vsub.f32 %v1642, %v1881
    %v1931 = vsub.f32 %v1643, %v1882
    %v1932 = vsub.f32 %v1644, %v1882
    %v1933 = vsub.f32 %v1645, %v1883
    %v1934 = vsub.f32 %v1646, %v1883
    %v1935 = vsub.f32 %v1647, %v1884
    %v1936 = vsub.f32 %v1648, %v1884
    %v1937 = vsub.f32 %v1649, %v1885
    %v1938 = vsub.f32 %v1650, %v1885
    %v1939 = vsub.f32 %v1651, %v1886
    %v1940 = vsub.f32 %v1652, %v1886
    %v1941 = vsub.f32 %v1653, %v1887
    %v1942 = vsub.f32 %v1654, %v1887
    %v1943 = vsub.f32 %v1655, %v1888
    %v1944 = vsub.f32 %v1656, %v1888
    %v1945 = vsub.f32 %v1657, %v1889
    %v1946 = vsub.f32 %v1658, %v1889
    %v1947 = vsub.f32 %v1659, %v1890
    %v1948 = vsub.f32 %v1660, %v1890
    %v1949 = vsub.f32 %v1661, %v1891
    %v1950 = vsub.f32 %v1662, %v1891
    %v1951 = vsub.f32 %v1663, %v1892
    %v1952 = vsub.f32 %v1664, %v1892
    %v1953 = vsub.f32 %v1665, %v1893
    %v1954 = vsub.f32 %v1666, %v1893
    %v1955 = vsub.f32 %v1667, %v1894
    %v1956 = vsub.f32 %v1668, %v1894
    %v1957 = vsub.f32 %v1669, %v1895
    %v1958 = vsub.f32 %v1670, %v1895
    %v1959 = vsub.f32 %v1671, %v1896
    %v1960 = vsub.f32 %v1672, %v1896
    %v1961 = vsub.f32 %v1673, %v1897
    %v1962 = vsub.f32 %v1674, %v1897
    %v1963 = vsub.f32 %v1675, %v1898
    %v1964 = vsub.f32 %v1676, %v1898
    %v1965 = vsub.f32 %v1677, %v1899
    %v1966 = vsub.f32 %v1678, %v1899
    %v1967 = vsub.f32 %v1679, %v1900
    %v1968 = vsub.f32 %v1680, %v1900
    %v1969 = vsub.f32 %v1681, %v1901
    %v1970 = vsub.f32 %v1682, %v1901
    %v1971 = vsub.f32 %v1683, %v1902
    %v1972 = vsub.f32 %v1684, %v1902
    %v1973 = vsub.f32 %v1685, %v1903
    %v1974 = vsub.f32 %v1686, %v1903
    %v1975 = vsub.f32 %v1687, %v1904
    %v1976 = vsub.f32 %v1688, %v1904
    %v1977 = vsub.f32 %v1689, %v1905
    %v1978 = vsub.f32 %v1690, %v1905
    %v1979 = vsub.f32 %v1691, %v1906
    %v1980 = vsub.f32 %v1692, %v1906
    %v1981 = vsub.f32 %v1693, %v1907
    %v1982 = vsub.f32 %v1694, %v1907
    %v1983 = vsub.f32 %v1695, %v1908
    %v1984 = vsub.f32 %v1696, %v1908
    %v1985 = vsub.f32 %v1697, %v1909
    %v1986 = vsub.f32 %v1698, %v1909
    %v1987 = vsub.f32 %v1699, %v1910
    %v1988 = vsub.f32 %v1700, %v1910
    %v1989 = vsub.f32 %v1701, %v1911
    %v1990 = vsub.f32 %v1702, %v1911
    %v1991 = vsub.f32 %v1703, %v1912
    %v1992 = vsub.f32 %v1704, %v1912
    %v1993 = vsub.f32 %v1705, %v1913
    %v1994 = vsub.f32 %v1706, %v1913
    %v1995 = vsub.f32 %v1707, %v1914
    %v1996 = vsub.f32 %v1708, %v1914
    %v1997 = vsub.f32 %v1709, %v1915
    %v1998 = vsub.f32 %v1710, %v1915
    %v1999 = vsub.f32 %v1711, %v1916
    %v2000 = vsub.f32 %v1712, %v1916
    %v2001 = vsub.f32 %v1713, %v1917
    %v2002 = vsub.f32 %v1714, %v1917
    %v2003 = vsub.f32 %v1715, %v1918
    %v2004 = vsub.f32 %v1716, %v1918
    %v2005 = vsub.f32 %v1717, %v1919
    %v2006 = vsub.f32 %v1718, %v1919
    %v2007 = vsub.f32 %v1719, %v1920
    %v2008 = vsub.f32 %v1720, %v1920
    %v2009 = vsub.f32 %v1721, %v1921
    %v2010 = vsub.f32 %v1722, %v1921
    %v2011 = vsub.f32 %v1723, %v1922
    %v2012 = vsub.f32 %v1724, %v1922
    %v2013 = vsub.f32 %v1725, %v1923
    %v2014 = vsub.f32 %v1726, %v1923
    %v2015 = vsub.f32 %v1727, %v1924
    %v2016 = vsub.f32 %v1728, %v1924
    %v2017 = vsub.f32 %v1729, %v1925
    %v2018 = vsub.f32 %v1730, %v1925
    %v2019 = vsub.f32 %v1731, %v1926
    %v2020 = vsub.f32 %v1732, %v1926
    %v2021 = vsub.f32 %v1733, %v1927
    %v2022 = vsub.f32 %v1734, %v1927
    %v2023 = vsub.f32 %v1735, %v1928
    %v2024 = vsub.f32 %v1736, %v1928
    %v2025 = vmul.f32 %v1929, %v1929
    %v2026 = vmul.f32 %v1930, %v1930
    %v2027 = vmul.f32 %v1931, %v1931
    %v2028 = vmul.f32 %v1932, %v1932
    %v2029 = vmul.f32 %v1933, %v1933
    %v2030 = vmul.f32 %v1934, %v1934
    %v2031 = vmul.f32 %v1935, %v1935
    %v2032 = vmul.f32 %v1936, %v1936
    %v2033 = vmul.f32 %v1937, %v1937
    %v2034 = vmul.f32 %v1938, %v1938
    %v2035 = vmul.f32 %v1939, %v1939
    %v2036 = vmul.f32 %v1940, %v1940
    %v2037 = vmul.f32 %v1941, %v1941
    %v2038 = vmul.f32 %v1942, %v1942
    %v2039 = vmul.f32 %v1943, %v1943
    %v2040 = vmul.f32 %v1944, %v1944
    %v2041 = vmul.f32 %v1945, %v1945
    %v2042 = vmul.f32 %v1946, %v1946
    %v2043 = vmul.f32 %v1947, %v1947
    %v2044 = vmul.f32 %v1948, %v1948
    %v2045 = vmul.f32 %v1949, %v1949
    %v2046 = vmul.f32 %v1950, %v1950
    %v2047 = vmul.f32 %v1951, %v1951
    %v2048 = vmul.f32 %v1952, %v1952
    %v2049 = vmul.f32 %v1953, %v1953
    %v2050 = vmul.f32 %v1954, %v1954
    %v2051 = vmul.f32 %v1955, %v1955
    %v2052 = vmul.f32 %v1956, %v1956
    %v2053 = vmul.f32 %v1957, %v1957
    %v2054 = vmul.f32 %v1958, %v1958
    %v2055 = vmul.f32 %v1959, %v1959
    %v2056 = vmul.f32 %v1960, %v1960
    %v2057 = vmul.f32 %v1961, %v1961
    %v2058 = vmul.f32 %v1962, %v1962
    %v2059 = vmul.f32 %v1963, %v1963
    %v2060 = vmul.f32 %v1964, %v1964
    %v2061 = vmul.f32 %v1965, %v1965
    %v2062 = vmul.f32 %v1966, %v1966
    %v2063 = vmul.f32 %v1967, %v1967
    %v2064 = vmul.f32 %v1968, %v1968
    %v2065 = vmul.f32 %v1969, %v1969
    %v2066 = vmul.f32 %v1970, %v1970
    %v2067 = vmul.f32 %v1971, %v1971
    %v2068 = vmul.f32 %v1972, %v1972
    %v2069 = vmul.f32 %v1973, %v1973
    %v2070 = vmul.f32 %v1974, %v1974
    %v2071 = vmul.f32 %v1975, %v1975
    %v2072 = vmul.f32 %v1976, %v1976
    %v2073 = vmul.f32 %v1977, %v1977
    %v2074 = vmul.f32 %v1978, %v1978
    %v2075 = vmul.f32 %v1979, %v1979
    %v2076 = vmul.f32 %v1980, %v1980
    %v2077 = vmul.f32 %v1981, %v1981
    %v2078 = vmul.f32 %v1982, %v1982
    %v2079 = vmul.f32 %v1983, %v1983
    %v2080 = vmul.f32 %v1984, %v1984
    %v2081 = vmul.f32 %v1985, %v1985
    %v2082 = vmul.f32 %v1986, %v1986
    %v2083 = vmul.f32 %v1987, %v1987
    %v2084 = vmul.f32 %v1988, %v1988
    %v2085 = vmul.f32 %v1989, %v1989
    %v2086 = vmul.f32 %v1990, %v1990
    %v2087 = vmul.f32 %v1991, %v1991
    %v2088 = vmul.f32 %v1992, %v1992
    %v2089 = vmul.f32 %v1993, %v1993
    %v2090 = vmul.f32 %v1994, %v1994
    %v2091 = vmul.f32 %v1995, %v1995
    %v2092 = vmul.f32 %v1996, %v1996
    %v2093 = vmul.f32 %v1997, %v1997
    %v2094 = vmul.f32 %v1998, %v1998
    %v2095 = vmul.f32 %v1999, %v1999
    %v2096 = vmul.f32 %v2000, %v2000
    %v2097 = vmul.f32 %v2001, %v2001
    %v2098 = vmul.f32 %v2002, %v2002
    %v2099 = vmul.f32 %v2003, %v2003
    %v2100 = vmul.f32 %v2004, %v2004
    %v2101 = vmul.f32 %v2005, %v2005
    %v2102 = vmul.f32 %v2006, %v2006
    %v2103 = vmul.f32 %v2007, %v2007
    %v2104 = vmul.f32 %v2008, %v2008
    %v2105 = vmul.f32 %v2009, %v2009
    %v2106 = vmul.f32 %v2010, %v2010
    %v2107 = vmul.f32 %v2011, %v2011
    %v2108 = vmul.f32 %v2012, %v2012
    %v2109 = vmul.f32 %v2013, %v2013
    %v2110 = vmul.f32 %v2014, %v2014
    %v2111 = vmul.f32 %v2015, %v2015
    %v2112 = vmul.f32 %v2016, %v2016
    %v2113 = vmul.f32 %v2017, %v2017
    %v2114 = vmul.f32 %v2018, %v2018
    %v2115 = vmul.f32 %v2019, %v2019
    %v2116 = vmul.f32 %v2020, %v2020
    %v2117 = vmul.f32 %v2021, %v2021
    %v2118 = vmul.f32 %v2022, %v2022
    %v2119 = vmul.f32 %v2023, %v2023
    %v2120 = vmul.f32 %v2024, %v2024
    %v2121 = vadd.f32 %v2025, %v2026
    %2122 = vadd.xlane.f32.xlu0 %v2121
    %v2123 = vpop.xlane.xlu0 %2122
    %v2124 = vadd.f32 %v2027, %v2028
    %2125 = vadd.xlane.f32.xlu0 %v2124
    %v2126 = vpop.xlane.xlu0 %2125
    %v2127 = vadd.f32 %v2029, %v2030
    %2128 = vadd.xlane.f32.xlu0 %v2127
    %v2129 = vpop.xlane.xlu0 %2128
    %v2130 = vadd.f32 %v2031, %v2032
    %2131 = vadd.xlane.f32.xlu0 %v2130
    %v2132 = vpop.xlane.xlu0 %2131
    %v2133 = vadd.f32 %v2033, %v2034
    %2134 = vadd.xlane.f32.xlu0 %v2133
    %v2135 = vpop.xlane.xlu0 %2134
    %v2136 = vadd.f32 %v2035, %v2036
    %2137 = vadd.xlane.f32.xlu0 %v2136
    %v2138 = vpop.xlane.xlu0 %2137
    %v2139 = vadd.f32 %v2037, %v2038
    %2140 = vadd.xlane.f32.xlu0 %v2139
    %v2141 = vpop.xlane.xlu0 %2140
    %v2142 = vadd.f32 %v2039, %v2040
    %2143 = vadd.xlane.f32.xlu0 %v2142
    %v2144 = vpop.xlane.xlu0 %2143
    %v2145 = vadd.f32 %v2041, %v2042
    %2146 = vadd.xlane.f32.xlu0 %v2145
    %v2147 = vpop.xlane.xlu0 %2146
    %v2148 = vadd.f32 %v2043, %v2044
    %2149 = vadd.xlane.f32.xlu0 %v2148
    %v2150 = vpop.xlane.xlu0 %2149
    %v2151 = vadd.f32 %v2045, %v2046
    %2152 = vadd.xlane.f32.xlu0 %v2151
    %v2153 = vpop.xlane.xlu0 %2152
    %v2154 = vadd.f32 %v2047, %v2048
    %2155 = vadd.xlane.f32.xlu0 %v2154
    %v2156 = vpop.xlane.xlu0 %2155
    %v2157 = vadd.f32 %v2049, %v2050
    %2158 = vadd.xlane.f32.xlu0 %v2157
    %v2159 = vpop.xlane.xlu0 %2158
    %v2160 = vadd.f32 %v2051, %v2052
    %2161 = vadd.xlane.f32.xlu0 %v2160
    %v2162 = vpop.xlane.xlu0 %2161
    %v2163 = vadd.f32 %v2053, %v2054
    %2164 = vadd.xlane.f32.xlu0 %v2163
    %v2165 = vpop.xlane.xlu0 %2164
    %v2166 = vadd.f32 %v2055, %v2056
    %2167 = vadd.xlane.f32.xlu0 %v2166
    %v2168 = vpop.xlane.xlu0 %2167
    %v2169 = vadd.f32 %v2057, %v2058
    %2170 = vadd.xlane.f32.xlu0 %v2169
    %v2171 = vpop.xlane.xlu0 %2170
    %v2172 = vadd.f32 %v2059, %v2060
    %2173 = vadd.xlane.f32.xlu0 %v2172
    %v2174 = vpop.xlane.xlu0 %2173
    %v2175 = vadd.f32 %v2061, %v2062
    %2176 = vadd.xlane.f32.xlu0 %v2175
    %v2177 = vpop.xlane.xlu0 %2176
    %v2178 = vadd.f32 %v2063, %v2064
    %2179 = vadd.xlane.f32.xlu0 %v2178
    %v2180 = vpop.xlane.xlu0 %2179
    %v2181 = vadd.f32 %v2065, %v2066
    %2182 = vadd.xlane.f32.xlu0 %v2181
    %v2183 = vpop.xlane.xlu0 %2182
    %v2184 = vadd.f32 %v2067, %v2068
    %2185 = vadd.xlane.f32.xlu0 %v2184
    %v2186 = vpop.xlane.xlu0 %2185
    %v2187 = vadd.f32 %v2069, %v2070
    %2188 = vadd.xlane.f32.xlu0 %v2187
    %v2189 = vpop.xlane.xlu0 %2188
    %v2190 = vadd.f32 %v2071, %v2072
    %2191 = vadd.xlane.f32.xlu0 %v2190
    %v2192 = vpop.xlane.xlu0 %2191
    %v2193 = vadd.f32 %v2073, %v2074
    %2194 = vadd.xlane.f32.xlu0 %v2193
    %v2195 = vpop.xlane.xlu0 %2194
    %v2196 = vadd.f32 %v2075, %v2076
    %2197 = vadd.xlane.f32.xlu0 %v2196
    %v2198 = vpop.xlane.xlu0 %2197
    %v2199 = vadd.f32 %v2077, %v2078
    %2200 = vadd.xlane.f32.xlu0 %v2199
    %v2201 = vpop.xlane.xlu0 %2200
    %v2202 = vadd.f32 %v2079, %v2080
    %2203 = vadd.xlane.f32.xlu0 %v2202
    %v2204 = vpop.xlane.xlu0 %2203
    %v2205 = vadd.f32 %v2081, %v2082
    %2206 = vadd.xlane.f32.xlu0 %v2205
    %v2207 = vpop.xlane.xlu0 %2206
    %v2208 = vadd.f32 %v2083, %v2084
    %2209 = vadd.xlane.f32.xlu0 %v2208
    %v2210 = vpop.xlane.xlu0 %2209
    %v2211 = vadd.f32 %v2085, %v2086
    %2212 = vadd.xlane.f32.xlu0 %v2211
    %v2213 = vpop.xlane.xlu0 %2212
    %v2214 = vadd.f32 %v2087, %v2088
    %2215 = vadd.xlane.f32.xlu0 %v2214
    %v2216 = vpop.xlane.xlu0 %2215
    %v2217 = vadd.f32 %v2089, %v2090
    %2218 = vadd.xlane.f32.xlu0 %v2217
    %v2219 = vpop.xlane.xlu0 %2218
    %v2220 = vadd.f32 %v2091, %v2092
    %2221 = vadd.xlane.f32.xlu0 %v2220
    %v2222 = vpop.xlane.xlu0 %2221
    %v2223 = vadd.f32 %v2093, %v2094
    %2224 = vadd.xlane.f32.xlu0 %v2223
    %v2225 = vpop.xlane.xlu0 %2224
    %v2226 = vadd.f32 %v2095, %v2096
    %2227 = vadd.xlane.f32.xlu0 %v2226
    %v2228 = vpop.xlane.xlu0 %2227
    %v2229 = vadd.f32 %v2097, %v2098
    %2230 = vadd.xlane.f32.xlu0 %v2229
    %v2231 = vpop.xlane.xlu0 %2230
    %v2232 = vadd.f32 %v2099, %v2100
    %2233 = vadd.xlane.f32.xlu0 %v2232
    %v2234 = vpop.xlane.xlu0 %2233
    %v2235 = vadd.f32 %v2101, %v2102
    %2236 = vadd.xlane.f32.xlu0 %v2235
    %v2237 = vpop.xlane.xlu0 %2236
    %v2238 = vadd.f32 %v2103, %v2104
    %2239 = vadd.xlane.f32.xlu0 %v2238
    %v2240 = vpop.xlane.xlu0 %2239
    %v2241 = vadd.f32 %v2105, %v2106
    %2242 = vadd.xlane.f32.xlu0 %v2241
    %v2243 = vpop.xlane.xlu0 %2242
    %v2244 = vadd.f32 %v2107, %v2108
    %2245 = vadd.xlane.f32.xlu0 %v2244
    %v2246 = vpop.xlane.xlu0 %2245
    %v2247 = vadd.f32 %v2109, %v2110
    %2248 = vadd.xlane.f32.xlu0 %v2247
    %v2249 = vpop.xlane.xlu0 %2248
    %v2250 = vadd.f32 %v2111, %v2112
    %2251 = vadd.xlane.f32.xlu0 %v2250
    %v2252 = vpop.xlane.xlu0 %2251
    %v2253 = vadd.f32 %v2113, %v2114
    %2254 = vadd.xlane.f32.xlu0 %v2253
    %v2255 = vpop.xlane.xlu0 %2254
    %v2256 = vadd.f32 %v2115, %v2116
    %2257 = vadd.xlane.f32.xlu0 %v2256
    %v2258 = vpop.xlane.xlu0 %2257
    %v2259 = vadd.f32 %v2117, %v2118
    %2260 = vadd.xlane.f32.xlu0 %v2259
    %v2261 = vpop.xlane.xlu0 %2260
    %v2262 = vadd.f32 %v2119, %v2120
    %2263 = vadd.xlane.f32.xlu0 %v2262
    %v2264 = vpop.xlane.xlu0 %2263
    %v2265 = vmul.f32 %v2123, 0.00390625
    %v2266 = vmul.f32 %v2126, 0.00390625
    %v2267 = vmul.f32 %v2129, 0.00390625
    %v2268 = vmul.f32 %v2132, 0.00390625
    %v2269 = vmul.f32 %v2135, 0.00390625
    %v2270 = vmul.f32 %v2138, 0.00390625
    %v2271 = vmul.f32 %v2141, 0.00390625
    %v2272 = vmul.f32 %v2144, 0.00390625
    %v2273 = vmul.f32 %v2147, 0.00390625
    %v2274 = vmul.f32 %v2150, 0.00390625
    %v2275 = vmul.f32 %v2153, 0.00390625
    %v2276 = vmul.f32 %v2156, 0.00390625
    %v2277 = vmul.f32 %v2159, 0.00390625
    %v2278 = vmul.f32 %v2162, 0.00390625
    %v2279 = vmul.f32 %v2165, 0.00390625
    %v2280 = vmul.f32 %v2168, 0.00390625
    %v2281 = vmul.f32 %v2171, 0.00390625
    %v2282 = vmul.f32 %v2174, 0.00390625
    %v2283 = vmul.f32 %v2177, 0.00390625
    %v2284 = vmul.f32 %v2180, 0.00390625
    %v2285 = vmul.f32 %v2183, 0.00390625
    %v2286 = vmul.f32 %v2186, 0.00390625
    %v2287 = vmul.f32 %v2189, 0.00390625
    %v2288 = vmul.f32 %v2192, 0.00390625
    %v2289 = vmul.f32 %v2195, 0.00390625
    %v2290 = vmul.f32 %v2198, 0.00390625
    %v2291 = vmul.f32 %v2201, 0.00390625
    %v2292 = vmul.f32 %v2204, 0.00390625
    %v2293 = vmul.f32 %v2207, 0.00390625
    %v2294 = vmul.f32 %v2210, 0.00390625
    %v2295 = vmul.f32 %v2213, 0.00390625
    %v2296 = vmul.f32 %v2216, 0.00390625
    %v2297 = vmul.f32 %v2219, 0.00390625
    %v2298 = vmul.f32 %v2222, 0.00390625
    %v2299 = vmul.f32 %v2225, 0.00390625
    %v2300 = vmul.f32 %v2228, 0.00390625
    %v2301 = vmul.f32 %v2231, 0.00390625
    %v2302 = vmul.f32 %v2234, 0.00390625
    %v2303 = vmul.f32 %v2237, 0.00390625
    %v2304 = vmul.f32 %v2240, 0.00390625
    %v2305 = vmul.f32 %v2243, 0.00390625
    %v2306 = vmul.f32 %v2246, 0.00390625
    %v2307 = vmul.f32 %v2249, 0.00390625
    %v2308 = vmul.f32 %v2252, 0.00390625
    %v2309 = vmul.f32 %v2255, 0.00390625
    %v2310 = vmul.f32 %v2258, 0.00390625
    %v2311 = vmul.f32 %v2261, 0.00390625
    %v2312 = vmul.f32 %v2264, 0.00390625
    %v2313 = vadd.f32 %v2265, 1e-12
    %v2314 = vadd.f32 %v2266, 1e-12
    %v2315 = vadd.f32 %v2267, 1e-12
    %v2316 = vadd.f32 %v2268, 1e-12
    %v2317 = vadd.f32 %v2269, 1e-12
    %v2318 = vadd.f32 %v2270, 1e-12
    %v2319 = vadd.f32 %v2271, 1e-12
    %v2320 = vadd.f32 %v2272, 1e-12
    %v2321 = vadd.f32 %v2273, 1e-12
    %v2322 = vadd.f32 %v2274, 1e-12
    %v2323 = vadd.f32 %v2275, 1e-12
    %v2324 = vadd.f32 %v2276, 1e-12
    %v2325 = vadd.f32 %v2277, 1e-12
    %v2326 = vadd.f32 %v2278, 1e-12
    %v2327 = vadd.f32 %v2279, 1e-12
    %v2328 = vadd.f32 %v2280, 1e-12
    %v2329 = vadd.f32 %v2281, 1e-12
    %v2330 = vadd.f32 %v2282, 1e-12
    %v2331 = vadd.f32 %v2283, 1e-12
    %v2332 = vadd.f32 %v2284, 1e-12
    %v2333 = vadd.f32 %v2285, 1e-12
    %v2334 = vadd.f32 %v2286, 1e-12
    %v2335 = vadd.f32 %v2287, 1e-12
    %v2336 = vadd.f32 %v2288, 1e-12
    %v2337 = vadd.f32 %v2289, 1e-12
    %v2338 = vadd.f32 %v2290, 1e-12
    %v2339 = vadd.f32 %v2291, 1e-12
    %v2340 = vadd.f32 %v2292, 1e-12
    %v2341 = vadd.f32 %v2293, 1e-12
    %v2342 = vadd.f32 %v2294, 1e-12
    %v2343 = vadd.f32 %v2295, 1e-12
    %v2344 = vadd.f32 %v2296, 1e-12
    %v2345 = vadd.f32 %v2297, 1e-12
    %v2346 = vadd.f32 %v2298, 1e-12
    %v2347 = vadd.f32 %v2299, 1e-12
    %v2348 = vadd.f32 %v2300, 1e-12
    %v2349 = vadd.f32 %v2301, 1e-12
    %v2350 = vadd.f32 %v2302, 1e-12
    %v2351 = vadd.f32 %v2303, 1e-12
    %v2352 = vadd.f32 %v2304, 1e-12
    %v2353 = vadd.f32 %v2305, 1e-12
    %v2354 = vadd.f32 %v2306, 1e-12
    %v2355 = vadd.f32 %v2307, 1e-12
    %v2356 = vadd.f32 %v2308, 1e-12
    %v2357 = vadd.f32 %v2309, 1e-12
    %v2358 = vadd.f32 %v2310, 1e-12
    %v2359 = vadd.f32 %v2311, 1e-12
    %v2360 = vadd.f32 %v2312, 1e-12
    %v2361 = vrsqrt.pop %v2313
    %v2362 = vrsqrt.pop %v2314
    %v2363 = vrsqrt.pop %v2315
    %v2364 = vrsqrt.pop %v2316
    %v2365 = vrsqrt.pop %v2317
    %v2366 = vrsqrt.pop %v2318
    %v2367 = vrsqrt.pop %v2319
    %v2368 = vrsqrt.pop %v2320
    %v2369 = vrsqrt.pop %v2321
    %v2370 = vrsqrt.pop %v2322
    %v2371 = vrsqrt.pop %v2323
    %v2372 = vrsqrt.pop %v2324
    %v2373 = vrsqrt.pop %v2325
    %v2374 = vrsqrt.pop %v2326
    %v2375 = vrsqrt.pop %v2327
    %v2376 = vrsqrt.pop %v2328
    %v2377 = vrsqrt.pop %v2329
    %v2378 = vrsqrt.pop %v2330
    %v2379 = vrsqrt.pop %v2331
    %v2380 = vrsqrt.pop %v2332
    %v2381 = vrsqrt.pop %v2333
    %v2382 = vrsqrt.pop %v2334
    %v2383 = vrsqrt.pop %v2335
    %v2384 = vrsqrt.pop %v2336
    %v2385 = vrsqrt.pop %v2337
    %v2386 = vrsqrt.pop %v2338
    %v2387 = vrsqrt.pop %v2339
    %v2388 = vrsqrt.pop %v2340
    %v2389 = vrsqrt.pop %v2341
    %v2390 = vrsqrt.pop %v2342
    %v2391 = vrsqrt.pop %v2343
    %v2392 = vrsqrt.pop %v2344
    %v2393 = vrsqrt.pop %v2345
    %v2394 = vrsqrt.pop %v2346
    %v2395 = vrsqrt.pop %v2347
    %v2396 = vrsqrt.pop %v2348
    %v2397 = vrsqrt.pop %v2349
    %v2398 = vrsqrt.pop %v2350
    %v2399 = vrsqrt.pop %v2351
    %v2400 = vrsqrt.pop %v2352
    %v2401 = vrsqrt.pop %v2353
    %v2402 = vrsqrt.pop %v2354
    %v2403 = vrsqrt.pop %v2355
    %v2404 = vrsqrt.pop %v2356
    %v2405 = vrsqrt.pop %v2357
    %v2406 = vrsqrt.pop %v2358
    %v2407 = vrsqrt.pop %v2359
    %v2408 = vrsqrt.pop %v2360
    %v2409 = vld [vmem:[%s3] sm:$0x3]
    %v2410 = vld [vmem:[%s4] sm:$0x3]
    %v2411 = vmul.f32 %v1929, %v2361
    %v2412 = vmul.f32 %v1930, %v2361
    %v2413 = vmul.f32 %v1931, %v2362
    %v2414 = vmul.f32 %v1932, %v2362
    %v2415 = vmul.f32 %v1933, %v2363
    %v2416 = vmul.f32 %v1934, %v2363
    %v2417 = vmul.f32 %v1935, %v2364
    %v2418 = vmul.f32 %v1936, %v2364
    %v2419 = vmul.f32 %v1937, %v2365
    %v2420 = vmul.f32 %v1938, %v2365
    %v2421 = vmul.f32 %v1939, %v2366
    %v2422 = vmul.f32 %v1940, %v2366
    %v2423 = vmul.f32 %v1941, %v2367
    %v2424 = vmul.f32 %v1942, %v2367
    %v2425 = vmul.f32 %v1943, %v2368
    %v2426 = vmul.f32 %v1944, %v2368
    %v2427 = vmul.f32 %v1945, %v2369
    %v2428 = vmul.f32 %v1946, %v2369
    %v2429 = vmul.f32 %v1947, %v2370
    %v2430 = vmul.f32 %v1948, %v2370
    %v2431 = vmul.f32 %v1949, %v2371
    %v2432 = vmul.f32 %v1950, %v2371
    %v2433 = vmul.f32 %v1951, %v2372
    %v2434 = vmul.f32 %v1952, %v2372
    %v2435 = vmul.f32 %v1953, %v2373
    %v2436 = vmul.f32 %v1954, %v2373
    %v2437 = vmul.f32 %v1955, %v2374
    %v2438 = vmul.f32 %v1956, %v2374
    %v2439 = vmul.f32 %v1957, %v2375
    %v2440 = vmul.f32 %v1958, %v2375
    %v2441 = vmul.f32 %v1959, %v2376
    %v2442 = vmul.f32 %v1960, %v2376
    %v2443 = vmul.f32 %v1961, %v2377
    %v2444 = vmul.f32 %v1962, %v2377
    %v2445 = vmul.f32 %v1963, %v2378
    %v2446 = vmul.f32 %v1964, %v2378
    %v2447 = vmul.f32 %v1965, %v2379
    %v2448 = vmul.f32 %v1966, %v2379
    %v2449 = vmul.f32 %v1967, %v2380
    %v2450 = vmul.f32 %v1968, %v2380
    %v2451 = vmul.f32 %v1969, %v2381
    %v2452 = vmul.f32 %v1970, %v2381
    %v2453 = vmul.f32 %v1971, %v2382
    %v2454 = vmul.f32 %v1972, %v2382
    %v2455 = vmul.f32 %v1973, %v2383
    %v2456 = vmul.f32 %v1974, %v2383
    %v2457 = vmul.f32 %v1975, %v2384
    %v2458 = vmul.f32 %v1976, %v2384
    %v2459 = vmul.f32 %v1977, %v2385
    %v2460 = vmul.f32 %v1978, %v2385
    %v2461 = vmul.f32 %v1979, %v2386
    %v2462 = vmul.f32 %v1980, %v2386
    %v2463 = vmul.f32 %v1981, %v2387
    %v2464 = vmul.f32 %v1982, %v2387
    %v2465 = vmul.f32 %v1983, %v2388
    %v2466 = vmul.f32 %v1984, %v2388
    %v2467 = vmul.f32 %v1985, %v2389
    %v2468 = vmul.f32 %v1986, %v2389
    %v2469 = vmul.f32 %v1987, %v2390
    %v2470 = vmul.f32 %v1988, %v2390
    %v2471 = vmul.f32 %v1989, %v2391
    %v2472 = vmul.f32 %v1990, %v2391
    %v2473 = vmul.f32 %v1991, %v2392
    %v2474 = vmul.f32 %v1992, %v2392
    %v2475 = vmul.f32 %v1993, %v2393
    %v2476 = vmul.f32 %v1994, %v2393
    %v2477 = vmul.f32 %v1995, %v2394
    %v2478 = vmul.f32 %v1996, %v2394
    %v2479 = vmul.f32 %v1997, %v2395
    %v2480 = vmul.f32 %v1998, %v2395
    %v2481 = vmul.f32 %v1999, %v2396
    %v2482 = vmul.f32 %v2000, %v2396
    %v2483 = vmul.f32 %v2001, %v2397
    %v2484 = vmul.f32 %v2002, %v2397
    %v2485 = vmul.f32 %v2003, %v2398
    %v2486 = vmul.f32 %v2004, %v2398
    %v2487 = vmul.f32 %v2005, %v2399
    %v2488 = vmul.f32 %v2006, %v2399
    %v2489 = vmul.f32 %v2007, %v2400
    %v2490 = vmul.f32 %v2008, %v2400
    %v2491 = vmul.f32 %v2009, %v2401
    %v2492 = vmul.f32 %v2010, %v2401
    %v2493 = vmul.f32 %v2011, %v2402
    %v2494 = vmul.f32 %v2012, %v2402
    %v2495 = vmul.f32 %v2013, %v2403
    %v2496 = vmul.f32 %v2014, %v2403
    %v2497 = vmul.f32 %v2015, %v2404
    %v2498 = vmul.f32 %v2016, %v2404
    %v2499 = vmul.f32 %v2017, %v2405
    %v2500 = vmul.f32 %v2018, %v2405
    %v2501 = vmul.f32 %v2019, %v2406
    %v2502 = vmul.f32 %v2020, %v2406
    %v2503 = vmul.f32 %v2021, %v2407
    %v2504 = vmul.f32 %v2022, %v2407
    %v2505 = vmul.f32 %v2023, %v2408
    %v2506 = vmul.f32 %v2024, %v2408
    %v2508 = vlaneseq
    %v2509 = vshrl.u32 %v2508, 7
    %v2510 = vsub.s32 0, %v2509
    %v2511 = vrot.slane %v2409, %v2510
    %v2512 = vlaneseq
    %v2513 = vshrl.u32 %v2512, 7
    %v2514 = vsub.s32 1, %v2513
    %v2515 = vrot.slane %v2409, %v2514
    %v2518 = vmul.f32 %v2411, %v2511
    %v2519 = vmul.f32 %v2412, %v2515
    %v2520 = vmul.f32 %v2413, %v2511
    %v2521 = vmul.f32 %v2414, %v2515
    %v2522 = vmul.f32 %v2415, %v2511
    %v2523 = vmul.f32 %v2416, %v2515
    %v2524 = vmul.f32 %v2417, %v2511
    %v2525 = vmul.f32 %v2418, %v2515
    %v2526 = vmul.f32 %v2419, %v2511
    %v2527 = vmul.f32 %v2420, %v2515
    %v2528 = vmul.f32 %v2421, %v2511
    %v2529 = vmul.f32 %v2422, %v2515
    %v2530 = vmul.f32 %v2423, %v2511
    %v2531 = vmul.f32 %v2424, %v2515
    %v2532 = vmul.f32 %v2425, %v2511
    %v2533 = vmul.f32 %v2426, %v2515
    %v2534 = vmul.f32 %v2427, %v2511
    %v2535 = vmul.f32 %v2428, %v2515
    %v2536 = vmul.f32 %v2429, %v2511
    %v2537 = vmul.f32 %v2430, %v2515
    %v2538 = vmul.f32 %v2431, %v2511
    %v2539 = vmul.f32 %v2432, %v2515
    %v2540 = vmul.f32 %v2433, %v2511
    %v2541 = vmul.f32 %v2434, %v2515
    %v2542 = vmul.f32 %v2435, %v2511
    %v2543 = vmul.f32 %v2436, %v2515
    %v2544 = vmul.f32 %v2437, %v2511
    %v2545 = vmul.f32 %v2438, %v2515
    %v2546 = vmul.f32 %v2439, %v2511
    %v2547 = vmul.f32 %v2440, %v2515
    %v2548 = vmul.f32 %v2441, %v2511
    %v2549 = vmul.f32 %v2442, %v2515
    %v2550 = vmul.f32 %v2443, %v2511
    %v2551 = vmul.f32 %v2444, %v2515
    %v2552 = vmul.f32 %v2445, %v2511
    %v2553 = vmul.f32 %v2446, %v2515
    %v2554 = vmul.f32 %v2447, %v2511
    %v2555 = vmul.f32 %v2448, %v2515
    %v2556 = vmul.f32 %v2449, %v2511
    %v2557 = vmul.f32 %v2450, %v2515
    %v2558 = vmul.f32 %v2451, %v2511
    %v2559 = vmul.f32 %v2452, %v2515
    %v2560 = vmul.f32 %v2453, %v2511
    %v2561 = vmul.f32 %v2454, %v2515
    %v2562 = vmul.f32 %v2455, %v2511
    %v2563 = vmul.f32 %v2456, %v2515
    %v2564 = vmul.f32 %v2457, %v2511
    %v2565 = vmul.f32 %v2458, %v2515
    %v2566 = vmul.f32 %v2459, %v2511
    %v2567 = vmul.f32 %v2460, %v2515
    %v2568 = vmul.f32 %v2461, %v2511
    %v2569 = vmul.f32 %v2462, %v2515
    %v2570 = vmul.f32 %v2463, %v2511
    %v2571 = vmul.f32 %v2464, %v2515
    %v2572 = vmul.f32 %v2465, %v2511
    %v2573 = vmul.f32 %v2466, %v2515
    %v2574 = vmul.f32 %v2467, %v2511
    %v2575 = vmul.f32 %v2468, %v2515
    %v2576 = vmul.f32 %v2469, %v2511
    %v2577 = vmul.f32 %v2470, %v2515
    %v2578 = vmul.f32 %v2471, %v2511
    %v2579 = vmul.f32 %v2472, %v2515
    %v2580 = vmul.f32 %v2473, %v2511
    %v2581 = vmul.f32 %v2474, %v2515
    %v2582 = vmul.f32 %v2475, %v2511
    %v2583 = vmul.f32 %v2476, %v2515
    %v2584 = vmul.f32 %v2477, %v2511
    %v2585 = vmul.f32 %v2478, %v2515
    %v2586 = vmul.f32 %v2479, %v2511
    %v2587 = vmul.f32 %v2480, %v2515
    %v2588 = vmul.f32 %v2481, %v2511
    %v2589 = vmul.f32 %v2482, %v2515
    %v2590 = vmul.f32 %v2483, %v2511
    %v2591 = vmul.f32 %v2484, %v2515
    %v2592 = vmul.f32 %v2485, %v2511
    %v2593 = vmul.f32 %v2486, %v2515
    %v2594 = vmul.f32 %v2487, %v2511
    %v2595 = vmul.f32 %v2488, %v2515
    %v2596 = vmul.f32 %v2489, %v2511
    %v2597 = vmul.f32 %v2490, %v2515
    %v2598 = vmul.f32 %v2491, %v2511
    %v2599 = vmul.f32 %v2492, %v2515
    %v2600 = vmul.f32 %v2493, %v2511
    %v2601 = vmul.f32 %v2494, %v2515
    %v2602 = vmul.f32 %v2495, %v2511
    %v2603 = vmul.f32 %v2496, %v2515
    %v2604 = vmul.f32 %v2497, %v2511
    %v2605 = vmul.f32 %v2498, %v2515
    %v2606 = vmul.f32 %v2499, %v2511
    %v2607 = vmul.f32 %v2500, %v2515
    %v2608 = vmul.f32 %v2501, %v2511
    %v2609 = vmul.f32 %v2502, %v2515
    %v2610 = vmul.f32 %v2503, %v2511
    %v2611 = vmul.f32 %v2504, %v2515
    %v2612 = vmul.f32 %v2505, %v2511
    %v2613 = vmul.f32 %v2506, %v2515
    %v2615 = vlaneseq
    %v2616 = vshrl.u32 %v2615, 7
    %v2617 = vsub.s32 0, %v2616
    %v2618 = vrot.slane %v2410, %v2617
    %v2619 = vlaneseq
    %v2620 = vshrl.u32 %v2619, 7
    %v2621 = vsub.s32 1, %v2620
    %v2622 = vrot.slane %v2410, %v2621
    %v2625 = vadd.f32 %v2518, %v2618
    %v2626 = vadd.f32 %v2519, %v2622
    %v2627 = vadd.f32 %v2520, %v2618
    %v2628 = vadd.f32 %v2521, %v2622
    %v2629 = vadd.f32 %v2522, %v2618
    %v2630 = vadd.f32 %v2523, %v2622
    %v2631 = vadd.f32 %v2524, %v2618
    %v2632 = vadd.f32 %v2525, %v2622
    %v2633 = vadd.f32 %v2526, %v2618
    %v2634 = vadd.f32 %v2527, %v2622
    %v2635 = vadd.f32 %v2528, %v2618
    %v2636 = vadd.f32 %v2529, %v2622
    %v2637 = vadd.f32 %v2530, %v2618
    %v2638 = vadd.f32 %v2531, %v2622
    %v2639 = vadd.f32 %v2532, %v2618
    %v2640 = vadd.f32 %v2533, %v2622
    %v2641 = vadd.f32 %v2534, %v2618
    %v2642 = vadd.f32 %v2535, %v2622
    %v2643 = vadd.f32 %v2536, %v2618
    %v2644 = vadd.f32 %v2537, %v2622
    %v2645 = vadd.f32 %v2538, %v2618
    %v2646 = vadd.f32 %v2539, %v2622
    %v2647 = vadd.f32 %v2540, %v2618
    %v2648 = vadd.f32 %v2541, %v2622
    %v2649 = vadd.f32 %v2542, %v2618
    %v2650 = vadd.f32 %v2543, %v2622
    %v2651 = vadd.f32 %v2544, %v2618
    %v2652 = vadd.f32 %v2545, %v2622
    %v2653 = vadd.f32 %v2546, %v2618
    %v2654 = vadd.f32 %v2547, %v2622
    %v2655 = vadd.f32 %v2548, %v2618
    %v2656 = vadd.f32 %v2549, %v2622
    %v2657 = vadd.f32 %v2550, %v2618
    %v2658 = vadd.f32 %v2551, %v2622
    %v2659 = vadd.f32 %v2552, %v2618
    %v2660 = vadd.f32 %v2553, %v2622
    %v2661 = vadd.f32 %v2554, %v2618
    %v2662 = vadd.f32 %v2555, %v2622
    %v2663 = vadd.f32 %v2556, %v2618
    %v2664 = vadd.f32 %v2557, %v2622
    %v2665 = vadd.f32 %v2558, %v2618
    %v2666 = vadd.f32 %v2559, %v2622
    %v2667 = vadd.f32 %v2560, %v2618
    %v2668 = vadd.f32 %v2561, %v2622
    %v2669 = vadd.f32 %v2562, %v2618
    %v2670 = vadd.f32 %v2563, %v2622
    %v2671 = vadd.f32 %v2564, %v2618
    %v2672 = vadd.f32 %v2565, %v2622
    %v2673 = vadd.f32 %v2566, %v2618
    %v2674 = vadd.f32 %v2567, %v2622
    %v2675 = vadd.f32 %v2568, %v2618
    %v2676 = vadd.f32 %v2569, %v2622
    %v2677 = vadd.f32 %v2570, %v2618
    %v2678 = vadd.f32 %v2571, %v2622
    %v2679 = vadd.f32 %v2572, %v2618
    %v2680 = vadd.f32 %v2573, %v2622
    %v2681 = vadd.f32 %v2574, %v2618
    %v2682 = vadd.f32 %v2575, %v2622
    %v2683 = vadd.f32 %v2576, %v2618
    %v2684 = vadd.f32 %v2577, %v2622
    %v2685 = vadd.f32 %v2578, %v2618
    %v2686 = vadd.f32 %v2579, %v2622
    %v2687 = vadd.f32 %v2580, %v2618
    %v2688 = vadd.f32 %v2581, %v2622
    %v2689 = vadd.f32 %v2582, %v2618
    %v2690 = vadd.f32 %v2583, %v2622
    %v2691 = vadd.f32 %v2584, %v2618
    %v2692 = vadd.f32 %v2585, %v2622
    %v2693 = vadd.f32 %v2586, %v2618
    %v2694 = vadd.f32 %v2587, %v2622
    %v2695 = vadd.f32 %v2588, %v2618
    %v2696 = vadd.f32 %v2589, %v2622
    %v2697 = vadd.f32 %v2590, %v2618
    %v2698 = vadd.f32 %v2591, %v2622
    %v2699 = vadd.f32 %v2592, %v2618
    %v2700 = vadd.f32 %v2593, %v2622
    %v2701 = vadd.f32 %v2594, %v2618
    %v2702 = vadd.f32 %v2595, %v2622
    %v2703 = vadd.f32 %v2596, %v2618
    %v2704 = vadd.f32 %v2597, %v2622
    %v2705 = vadd.f32 %v2598, %v2618
    %v2706 = vadd.f32 %v2599, %v2622
    %v2707 = vadd.f32 %v2600, %v2618
    %v2708 = vadd.f32 %v2601, %v2622
    %v2709 = vadd.f32 %v2602, %v2618
    %v2710 = vadd.f32 %v2603, %v2622
    %v2711 = vadd.f32 %v2604, %v2618
    %v2712 = vadd.f32 %v2605, %v2622
    %v2713 = vadd.f32 %v2606, %v2618
    %v2714 = vadd.f32 %v2607, %v2622
    %v2715 = vadd.f32 %v2608, %v2618
    %v2716 = vadd.f32 %v2609, %v2622
    %v2717 = vadd.f32 %v2610, %v2618
    %v2718 = vadd.f32 %v2611, %v2622
    %v2719 = vadd.f32 %v2612, %v2618
    %v2720 = vadd.f32 %v2613, %v2622
    %2721 = vst [vmem:[#allocation9] sm:$0xff] %v2625
    %2722 = vst [vmem:[#allocation9 + $0x8] sm:$0xff] %v2626
    %2723 = vst [vmem:[#allocation9 + $0x10] sm:$0xff] %v2627
    %2724 = vst [vmem:[#allocation9 + $0x18] sm:$0xff] %v2628
    %2725 = vst [vmem:[#allocation9 + $0x20] sm:$0xff] %v2629
    %2726 = vst [vmem:[#allocation9 + $0x28] sm:$0xff] %v2630
    %2727 = vst [vmem:[#allocation9 + $0x30] sm:$0xff] %v2631
    %2728 = vst [vmem:[#allocation9 + $0x38] sm:$0xff] %v2632
    %2729 = vst [vmem:[#allocation9 + $0x40] sm:$0xff] %v2633
    %2730 = vst [vmem:[#allocation9 + $0x48] sm:$0xff] %v2634
    %2731 = vst [vmem:[#allocation9 + $0x50] sm:$0xff] %v2635
    %2732 = vst [vmem:[#allocation9 + $0x58] sm:$0xff] %v2636
    %2733 = vst [vmem:[#allocation9 + $0x60] sm:$0xff] %v2637
    %2734 = vst [vmem:[#allocation9 + $0x68] sm:$0xff] %v2638
    %2735 = vst [vmem:[#allocation9 + $0x70] sm:$0xff] %v2639
    %2736 = vst [vmem:[#allocation9 + $0x78] sm:$0xff] %v2640
    %2737 = vst [vmem:[#allocation9 + $0x80] sm:$0xff] %v2641
    %2738 = vst [vmem:[#allocation9 + $0x88] sm:$0xff] %v2642
    %2739 = vst [vmem:[#allocation9 + $0x90] sm:$0xff] %v2643
    %2740 = vst [vmem:[#allocation9 + $0x98] sm:$0xff] %v2644
    %2741 = vst [vmem:[#allocation9 + $0xa0] sm:$0xff] %v2645
    %2742 = vst [vmem:[#allocation9 + $0xa8] sm:$0xff] %v2646
    %2743 = vst [vmem:[#allocation9 + $0xb0] sm:$0xff] %v2647
    %2744 = vst [vmem:[#allocation9 + $0xb8] sm:$0xff] %v2648
    %2745 = vst [vmem:[#allocation9 + $0xc0] sm:$0xff] %v2649
    %2746 = vst [vmem:[#allocation9 + $0xc8] sm:$0xff] %v2650
    %2747 = vst [vmem:[#allocation9 + $0xd0] sm:$0xff] %v2651
    %2748 = vst [vmem:[#allocation9 + $0xd8] sm:$0xff] %v2652
    %2749 = vst [vmem:[#allocation9 + $0xe0] sm:$0xff] %v2653
    %2750 = vst [vmem:[#allocation9 + $0xe8] sm:$0xff] %v2654
    %2751 = vst [vmem:[#allocation9 + $0xf0] sm:$0xff] %v2655
    %2752 = vst [vmem:[#allocation9 + $0xf8] sm:$0xff] %v2656
    %2753 = vst [vmem:[#allocation9 + $0x100] sm:$0xff] %v2657
    %2754 = vst [vmem:[#allocation9 + $0x108] sm:$0xff] %v2658
    %2755 = vst [vmem:[#allocation9 + $0x110] sm:$0xff] %v2659
    %2756 = vst [vmem:[#allocation9 + $0x118] sm:$0xff] %v2660
    %2757 = vst [vmem:[#allocation9 + $0x120] sm:$0xff] %v2661
    %2758 = vst [vmem:[#allocation9 + $0x128] sm:$0xff] %v2662
    %2759 = vst [vmem:[#allocation9 + $0x130] sm:$0xff] %v2663
    %2760 = vst [vmem:[#allocation9 + $0x138] sm:$0xff] %v2664
    %2761 = vst [vmem:[#allocation9 + $0x140] sm:$0xff] %v2665
    %2762 = vst [vmem:[#allocation9 + $0x148] sm:$0xff] %v2666
    %2763 = vst [vmem:[#allocation9 + $0x150] sm:$0xff] %v2667
    %2764 = vst [vmem:[#allocation9 + $0x158] sm:$0xff] %v2668
    %2765 = vst [vmem:[#allocation9 + $0x160] sm:$0xff] %v2669
    %2766 = vst [vmem:[#allocation9 + $0x168] sm:$0xff] %v2670
    %2767 = vst [vmem:[#allocation9 + $0x170] sm:$0xff] %v2671
    %2768 = vst [vmem:[#allocation9 + $0x178] sm:$0xff] %v2672
    %2769 = vst [vmem:[#allocation9 + $0x180] sm:$0xff] %v2673
    %2770 = vst [vmem:[#allocation9 + $0x188] sm:$0xff] %v2674
    %2771 = vst [vmem:[#allocation9 + $0x190] sm:$0xff] %v2675
    %2772 = vst [vmem:[#allocation9 + $0x198] sm:$0xff] %v2676
    %2773 = vst [vmem:[#allocation9 + $0x1a0] sm:$0xff] %v2677
    %2774 = vst [vmem:[#allocation9 + $0x1a8] sm:$0xff] %v2678
    %2775 = vst [vmem:[#allocation9 + $0x1b0] sm:$0xff] %v2679
    %2776 = vst [vmem:[#allocation9 + $0x1b8] sm:$0xff] %v2680
    %2777 = vst [vmem:[#allocation9 + $0x1c0] sm:$0xff] %v2681
    %2778 = vst [vmem:[#allocation9 + $0x1c8] sm:$0xff] %v2682
    %2779 = vst [vmem:[#allocation9 + $0x1d0] sm:$0xff] %v2683
    %2780 = vst [vmem:[#allocation9 + $0x1d8] sm:$0xff] %v2684
    %2781 = vst [vmem:[#allocation9 + $0x1e0] sm:$0xff] %v2685
    %2782 = vst [vmem:[#allocation9 + $0x1e8] sm:$0xff] %v2686
    %2783 = vst [vmem:[#allocation9 + $0x1f0] sm:$0xff] %v2687
    %2784 = vst [vmem:[#allocation9 + $0x1f8] sm:$0xff] %v2688
    %2785 = vst [vmem:[#allocation9 + $0x200] sm:$0xff] %v2689
    %2786 = vst [vmem:[#allocation9 + $0x208] sm:$0xff] %v2690
    %2787 = vst [vmem:[#allocation9 + $0x210] sm:$0xff] %v2691
    %2788 = vst [vmem:[#allocation9 + $0x218] sm:$0xff] %v2692
    %2789 = vst [vmem:[#allocation9 + $0x220] sm:$0xff] %v2693
    %2790 = vst [vmem:[#allocation9 + $0x228] sm:$0xff] %v2694
    %2791 = vst [vmem:[#allocation9 + $0x230] sm:$0xff] %v2695
    %2792 = vst [vmem:[#allocation9 + $0x238] sm:$0xff] %v2696
    %2793 = vst [vmem:[#allocation9 + $0x240] sm:$0xff] %v2697
    %2794 = vst [vmem:[#allocation9 + $0x248] sm:$0xff] %v2698
    %2795 = vst [vmem:[#allocation9 + $0x250] sm:$0xff] %v2699
    %2796 = vst [vmem:[#allocation9 + $0x258] sm:$0xff] %v2700
    %2797 = vst [vmem:[#allocation9 + $0x260] sm:$0xff] %v2701
    %2798 = vst [vmem:[#allocation9 + $0x268] sm:$0xff] %v2702
    %2799 = vst [vmem:[#allocation9 + $0x270] sm:$0xff] %v2703
    %2800 = vst [vmem:[#allocation9 + $0x278] sm:$0xff] %v2704
    %2801 = vst [vmem:[#allocation9 + $0x280] sm:$0xff] %v2705
    %2802 = vst [vmem:[#allocation9 + $0x288] sm:$0xff] %v2706
    %2803 = vst [vmem:[#allocation9 + $0x290] sm:$0xff] %v2707
    %2804 = vst [vmem:[#allocation9 + $0x298] sm:$0xff] %v2708
    %2805 = vst [vmem:[#allocation9 + $0x2a0] sm:$0xff] %v2709
    %2806 = vst [vmem:[#allocation9 + $0x2a8] sm:$0xff] %v2710
    %2807 = vst [vmem:[#allocation9 + $0x2b0] sm:$0xff] %v2711
    %2808 = vst [vmem:[#allocation9 + $0x2b8] sm:$0xff] %v2712
    %2809 = vst [vmem:[#allocation9 + $0x2c0] sm:$0xff] %v2713
    %2810 = vst [vmem:[#allocation9 + $0x2c8] sm:$0xff] %v2714
    %2811 = vst [vmem:[#allocation9 + $0x2d0] sm:$0xff] %v2715
    %2812 = vst [vmem:[#allocation9 + $0x2d8] sm:$0xff] %v2716
    %2813 = vst [vmem:[#allocation9 + $0x2e0] sm:$0xff] %v2717
    %2814 = vst [vmem:[#allocation9 + $0x2e8] sm:$0xff] %v2718
    %2815 = vst [vmem:[#allocation9 + $0x2f0] sm:$0xff] %v2719
    %2816 = vst [vmem:[#allocation9 + $0x2f8] sm:$0xff] %v2720
    // Predicated region
    $region26: #{dropout_add_layernorm.1} parent=1 // pred_check
      _
    $region27: #{dropout_add_layernorm.1} parent=1 // pred_check_branch
      %2818 = sbr.rel (0) target = $region29
    $region28: #{dropout_add_layernorm.1} parent=1 // pred_region
      %s2820 = ssub.s32 12288, 12288
      %2821 = vsyncadd [#allocation6], %s2820
      %s2822 = sshll.u32 [#allocation9], 4
      %s2823 = int_to_ptr.vmem [resolvable:$true] %s2822
      %2828 = dma.vmem_to_hbm [thread:$0]  %s2823, 12288, %s5, [#allocation6], 256, 256, 16
    $region29: #{dropout_add_layernorm.1} parent=1 // pred_fallthru
      _
    // Predicated region
    $region30: #{dropout_add_layernorm.1} parent=1 // pred_check
      _
    $region31: #{dropout_add_layernorm.1} parent=1 // pred_check_branch
      %2830 = sbr.rel (0) target = $region33
    $region32: #{dropout_add_layernorm.1} parent=1 // pred_region
      %2831 = dma.done [#allocation6], 12288
    $region33: #{dropout_add_layernorm.1} parent=1 // pred_fallthru
      _
    %2832 = vsyncpa [#allocation5], 1
    %2833 = vsyncpa [#allocation8], 1
    %2834 = vsyncpa [#allocation6], 1

</llo_original>
